<compile_context>
chip_gen: v7x
topology: tpu7x:2x2x1
jax: 0.10.0
libtpu: 0.0.40
codegen_flags: <defaults>
</compile_context>

<pallas_src>
import functools
import math

import jax
import jax.numpy as jnp
from jax.experimental import pallas as pl
from jax.experimental.pallas import tpu as pltpu


def _round_up(n: int, m: int) -> int:
    return ((n + m - 1) // m) * m


def _cdiv(a: int, b: int) -> int:
    return -(-a // b)


def _feature_alignment(d: int) -> int:
    # v6e/v7x MXU tiles are 256 wide: pad big layers to 256 so N fills the systolic
    # array; small layers stay 128-aligned (lane width, also the v5e-native MXU size).
    return 256 if d >= 256 else 128


def _mlp_fused_kernel(x_ref, *refs, num_layers: int):
    """Whole-MLP kernel for one batch tile.

    x_ref : (TILE_B, D0)              VMEM   f32 input tile (un-padded lane dim)
    refs  : (w0, b0, ..., w_{L-1}, b_{L-1}, o_ref)
            wi : (Di_blk, D(i+1)_blk) VMEM   bf16, resident across all grid steps
            bi : (1, D(i+1)_blk)      VMEM   f32,  resident across all grid steps
    o_ref : (TILE_B, DL_blk)          VMEM   output tile
    """
    o_ref = refs[-1]
    wb = refs[:-1]

    act = x_ref[...]  # f32 running activation; lives in VMEM/vregs, never leaves chip
    for layer in range(num_layers):
        w = wb[2 * layer][...]        # bf16 weight (rated MXU throughput path)
        b = wb[2 * layer + 1][...]    # f32 bias
        y = jnp.dot(act.astype(jnp.bfloat16), w,
                    preferred_element_type=jnp.float32) + b
        if layer < num_layers - 1:
            # SiLU(y) = y * sigmoid(y), kept in f32 (VPU mul + EUP exp; v5e-safe).
            y = y * jax.nn.sigmoid(y)
        act = y
    o_ref[...] = act.astype(o_ref.dtype)


def pack_mlp_params(params, input_dim):
    """One-time (init-time) padding + bf16 cast of every Linear's weight/bias.

    Returns (flat [w0, b0, w1, b1, ...], true dims per boundary, padded block dims).
    Zero padding is exact: padded columns stay 0 through bias add and SiLU.
    """
    dims = [input_dim] + [w.shape[1] for (w, _) in params]
    # bdims[0] is the true input dim (input stays un-padded on the lane axis);
    # every later boundary is padded to a 128/256 multiple.
    bdims = [input_dim] + [_round_up(d, _feature_alignment(d)) for d in dims[1:]]
    packed = []
    for li, (w, b) in enumerate(params):
        d0, d1 = w.shape
        w_p = jnp.zeros((bdims[li], bdims[li + 1]), jnp.bfloat16)
        w_p = w_p.at[:d0, :d1].set(w.astype(jnp.bfloat16))
        b_p = jnp.zeros((1, bdims[li + 1]), jnp.float32).at[0, :d1].set(b.reshape(-1))
        packed.extend([w_p, b_p])
    return packed, dims, bdims


def _vmem_budget_bytes(tile_b, bdims, num_layers):
    """Computed VMEM footprint (bytes) with headroom, clamped to the v7x 64 MiB ceiling."""
    fp = 0
    fp += 2 * tile_b * bdims[0] * 4           # input tile, double-buffered, f32
    fp += 2 * tile_b * bdims[-1] * 4          # output tile, double-buffered, f32
    for li in range(num_layers):
        fp += bdims[li] * bdims[li + 1] * 2   # bf16 weight, single-buffered
        fp += 8 * bdims[li + 1] * 4           # bias row pads to 8 sublanes, f32
    fp += 3 * tile_b * max(bdims) * 4         # live activations / bf16 copies slack
    return int(min(64 << 20, max(32 << 20, 2 * fp)))


def mlp_forward(x, packed_params, dims, bdims, *, tile_b: int = 256):
    """Apply the fused MLP kernel.

    x             : (B, input_dim) f32
    packed_params : output of pack_mlp_params (pre-padded bf16 weights, f32 biases)
    """
    B, d_in = x.shape
    assert d_in == dims[0] == bdims[0]
    num_layers = len(dims) - 1

    # Batch tile: sublane-aligned; keep >= 2 grid steps so the "parallel" batch axis
    # can actually be split across v7x's two TensorCores.
    tile_b = _round_up(max(8, min(tile_b, _round_up(B, 8))), 8)
    while tile_b > 8 and _cdiv(B, tile_b) < 2:
        tile_b = _round_up(max(8, tile_b // 2), 8)
    Bp = _round_up(B, tile_b)
    grid = (Bp // tile_b,)

    # Only the batch axis may need padding (no per-call lane padding of x).
    x_p = x if Bp == B else jnp.zeros((Bp, d_in), x.dtype).at[:B].set(x)

    vmem_bytes = _vmem_budget_bytes(tile_b, bdims, num_layers)
    # TODO(synk): if resident bf16 weights ever exceed ~70% of v7x's 64 MiB VMEM,
    # fall back to tiling over layers / the K dim instead of keeping all layers resident.

    kernel = functools.partial(_mlp_fused_kernel, num_layers=num_layers)

    def run(weight_pipeline_mode):
        wkw = {} if weight_pipeline_mode is None else {"pipeline_mode": weight_pipeline_mode}
        # Input tile steps over the batch grid; weights/biases use constant index_maps
        # so they are fetched once and stay resident in VMEM.
        in_specs = [pl.BlockSpec((tile_b, bdims[0]), lambda i: (i, 0))]
        for li in range(num_layers):
            in_specs.append(
                pl.BlockSpec((bdims[li], bdims[li + 1]), lambda i: (0, 0), **wkw))
            in_specs.append(
                pl.BlockSpec((1, bdims[li + 1]), lambda i: (0, 0), **wkw))
        out_spec = pl.BlockSpec((tile_b, bdims[-1]), lambda i: (i, 0))
        return pl.pallas_call(
            kernel,
            out_shape=jax.ShapeDtypeStruct((Bp, bdims[-1]), x.dtype),
            grid_spec=pltpu.PrefetchScalarGridSpec(
                num_scalar_prefetch=0,
                grid=grid,
                in_specs=in_specs,
                out_specs=out_spec,
            ),
            compiler_params=pltpu.CompilerParams(
                dimension_semantics=("parallel",),   # batch is independent work
                vmem_limit_bytes=vmem_bytes,
            ),
        )(x_p, *packed_params)

    try:
        # Resident blocks: constant index_map -> a single buffer is enough (halves the
        # weight VMEM vs. the default double-buffering; matters on v7x's 64 MiB).
        out_p = run(pl.Buffered(1))
    except Exception:
        out_p = run(None)  # fall back to default pipelining if single-buffer unsupported

    # Strip batch and feature padding.
    # TODO(synk): consumers that can accept the lane-padded slab should, to avoid this
    # extra XLA copy over the whole output.
    return out_p[:B, : dims[-1]]


def init_mlp_params(key, input_dim, out_dim, hidden_layer_dims):
    """PyTorch-style uniform(-1/sqrt(fan_in), +1/sqrt(fan_in)) init for each Linear."""
    dims = [input_dim] + list(hidden_layer_dims) + [out_dim]
    params = []
    for i in range(len(dims) - 1):
        d_in, d_out = dims[i], dims[i + 1]
        key, wk, bk = jax.random.split(key, 3)
        bound = 1.0 / math.sqrt(d_in)
        # stored (in, out): transpose of PyTorch's (out, in) layout -> y = x @ W + b
        w = jax.random.uniform(wk, (d_in, d_out), jnp.float32, -bound, bound)
        b = jax.random.uniform(bk, (d_out,), jnp.float32, -bound, bound)
        params.append((w, b))
    return params


def mlp_reference(x, params, *, bf16_matmul=False):
    """Pure-JAX reference.  bf16_matmul=True mirrors the kernel's compute recipe
    (bf16 operands, f32 accumulation, f32 SiLU) for a tight comparison."""
    n = len(params)
    for i, (w, b) in enumerate(params):
        if bf16_matmul:
            y = jnp.dot(x.astype(jnp.bfloat16), w.astype(jnp.bfloat16),
                        preferred_element_type=jnp.float32) + b
        else:
            y = x @ w + b
        if i < n - 1:
            y = y * jax.nn.sigmoid(y)
        x = y
    return x


if __name__ == "__main__":
    key = jax.random.PRNGKey(0)
    k_x, k_p = jax.random.split(key)

    batch = 256               # > tile after the >=2-grid-steps clamp -> 2 grid steps
    input_dim = 32
    hidden_layer_dims = (64, 64)
    out_dim = 16

    x = jax.random.normal(k_x, (batch, input_dim), jnp.float32)
    params = init_mlp_params(k_p, input_dim, out_dim, hidden_layer_dims)
    packed, dims, bdims = pack_mlp_params(params, input_dim)

    out = mlp_forward(x, packed, dims, bdims)
    out = jax.block_until_ready(out)
    assert out.shape == (batch, out_dim)

    # Tight check against a reference using the identical bf16-operand recipe.
    ref_bf16 = mlp_reference(x, params, bf16_matmul=True)
    assert jnp.allclose(out, ref_bf16, atol=1e-4, rtol=1e-4), "mismatch vs bf16 reference"

    # Loose sanity check against the exact f32 (PyTorch-equivalent) forward
    # (bf16 MXU operands change numerics slightly; accumulation is still f32).
    ref_f32 = mlp_reference(x, params)
    assert float(jnp.max(jnp.abs(out - ref_f32))) < 1e-1, "drifted too far from f32 reference"

    print("KERNEL_OK")
</pallas_src>

<mosaic_0001>
module attributes {stable_mosaic.version = 11 : i64} {
  func.func @_mlp_fused_kernel(%arg0: i32, %arg1: memref<128x32xf32, #tpu.memory_space<vmem>>, %arg2: memref<32x128xbf16, #tpu.memory_space<vmem>>, %arg3: memref<1x128xf32, #tpu.memory_space<vmem>>, %arg4: memref<128x128xbf16, #tpu.memory_space<vmem>>, %arg5: memref<1x128xf32, #tpu.memory_space<vmem>>, %arg6: memref<128x128xbf16, #tpu.memory_space<vmem>>, %arg7: memref<1x128xf32, #tpu.memory_space<vmem>>, %arg8: memref<128x128xf32, #tpu.memory_space<vmem>>) attributes {dimension_semantics = [#tpu.dimension_semantics<parallel>], iteration_bounds = array<i64: 2>, scalar_prefetch = 0 : i64, scratch_operands = 0 : i64, tpu.core_type = #tpu.core_type<tc>, window_params = [{transform_indices = @transform_0, window_bounds = array<i64: 128, 32>}, {pipeline_mode = #tpu.pipeline_mode<synchronous>, transform_indices = @transform_1, window_bounds = array<i64: 32, 128>}, {pipeline_mode = #tpu.pipeline_mode<synchronous>, transform_indices = @transform_2, window_bounds = array<i64: 1, 128>}, {pipeline_mode = #tpu.pipeline_mode<synchronous>, transform_indices = @transform_3, window_bounds = array<i64: 128, 128>}, {pipeline_mode = #tpu.pipeline_mode<synchronous>, transform_indices = @transform_4, window_bounds = array<i64: 1, 128>}, {pipeline_mode = #tpu.pipeline_mode<synchronous>, transform_indices = @transform_5, window_bounds = array<i64: 128, 128>}, {pipeline_mode = #tpu.pipeline_mode<synchronous>, transform_indices = @transform_6, window_bounds = array<i64: 1, 128>}, {transform_indices = @transform_7, window_bounds = array<i64: 128, 128>}]} {
    %c0 = arith.constant 0 : index
    %c0_0 = arith.constant 0 : index
    %0 = vector.load %arg1[%c0, %c0_0] : memref<128x32xf32, #tpu.memory_space<vmem>>, vector<128x32xf32>
    %c0_1 = arith.constant 0 : index
    %c0_2 = arith.constant 0 : index
    %1 = vector.load %arg2[%c0_1, %c0_2] : memref<32x128xbf16, #tpu.memory_space<vmem>>, vector<32x128xbf16>
    %c0_3 = arith.constant 0 : index
    %c0_4 = arith.constant 0 : index
    %2 = vector.load %arg3[%c0_3, %c0_4] : memref<1x128xf32, #tpu.memory_space<vmem>>, vector<1x128xf32>
    %3 = arith.truncf %0 : vector<128x32xf32> to vector<128x32xbf16>
    %cst = arith.constant dense<0.000000e+00> : vector<128x128xf32>
    %4 = tpu.matmul %3, %1, %cst {dimension_numbers = #tpu.dot_dimension_numbers<[1], [0], [0], [1], [0, 0, 1, 1], [], []>} : vector<128x32xbf16>, vector<32x128xbf16>, vector<128x128xf32> -> vector<128x128xf32>
    %5 = vector.broadcast %2 : vector<1x128xf32> to vector<128x128xf32>
    %6 = arith.addf %4, %5 : vector<128x128xf32>
    %7 = arith.negf %6 : vector<128x128xf32>
    %8 = math.exp %7 : vector<128x128xf32>
    %cst_5 = arith.constant 1.000000e+00 : f32
    %9 = vector.broadcast %cst_5 : f32 to vector<128x128xf32>
    %10 = arith.addf %9, %8 : vector<128x128xf32>
    %11 = arith.divf %9, %10 : vector<128x128xf32>
    %12 = arith.mulf %6, %11 : vector<128x128xf32>
    %c0_6 = arith.constant 0 : index
    %c0_7 = arith.constant 0 : index
    %13 = vector.load %arg4[%c0_6, %c0_7] : memref<128x128xbf16, #tpu.memory_space<vmem>>, vector<128x128xbf16>
    %c0_8 = arith.constant 0 : index
    %c0_9 = arith.constant 0 : index
    %14 = vector.load %arg5[%c0_8, %c0_9] : memref<1x128xf32, #tpu.memory_space<vmem>>, vector<1x128xf32>
    %15 = arith.truncf %12 : vector<128x128xf32> to vector<128x128xbf16>
    %cst_10 = arith.constant dense<0.000000e+00> : vector<128x128xf32>
    %16 = tpu.matmul %15, %13, %cst_10 {dimension_numbers = #tpu.dot_dimension_numbers<[1], [0], [0], [1], [0, 0, 1, 1], [], []>} : vector<128x128xbf16>, vector<128x128xbf16>, vector<128x128xf32> -> vector<128x128xf32>
    %17 = vector.broadcast %14 : vector<1x128xf32> to vector<128x128xf32>
    %18 = arith.addf %16, %17 : vector<128x128xf32>
    %19 = arith.negf %18 : vector<128x128xf32>
    %20 = math.exp %19 : vector<128x128xf32>
    %cst_11 = arith.constant 1.000000e+00 : f32
    %21 = vector.broadcast %cst_11 : f32 to vector<128x128xf32>
    %22 = arith.addf %21, %20 : vector<128x128xf32>
    %23 = arith.divf %21, %22 : vector<128x128xf32>
    %24 = arith.mulf %18, %23 : vector<128x128xf32>
    %c0_12 = arith.constant 0 : index
    %c0_13 = arith.constant 0 : index
    %25 = vector.load %arg6[%c0_12, %c0_13] : memref<128x128xbf16, #tpu.memory_space<vmem>>, vector<128x128xbf16>
    %c0_14 = arith.constant 0 : index
    %c0_15 = arith.constant 0 : index
    %26 = vector.load %arg7[%c0_14, %c0_15] : memref<1x128xf32, #tpu.memory_space<vmem>>, vector<1x128xf32>
    %27 = arith.truncf %24 : vector<128x128xf32> to vector<128x128xbf16>
    %cst_16 = arith.constant dense<0.000000e+00> : vector<128x128xf32>
    %28 = tpu.matmul %27, %25, %cst_16 {dimension_numbers = #tpu.dot_dimension_numbers<[1], [0], [0], [1], [0, 0, 1, 1], [], []>} : vector<128x128xbf16>, vector<128x128xbf16>, vector<128x128xf32> -> vector<128x128xf32>
    %29 = vector.broadcast %26 : vector<1x128xf32> to vector<128x128xf32>
    %30 = arith.addf %28, %29 : vector<128x128xf32>
    %c0_17 = arith.constant 0 : index
    %c0_18 = arith.constant 0 : index
    %31 = vector.load %arg8[%c0_17, %c0_18] : memref<128x128xf32, #tpu.memory_space<vmem>>, vector<128x128xf32>
    tpu.vector_store %arg8[%c0_17, %c0_18], %30 {strides = array<i32>} : memref<128x128xf32, #tpu.memory_space<vmem>>, vector<128x128xf32>,
    return
  }
  func.func @transform_0(%arg0: i32) -> (i32, i32) {
    %c0_i32 = arith.constant 0 : i32
    %c0_i32_0 = arith.constant 0 : i32
    return %arg0, %c0_i32 : i32, i32
  }
  func.func @transform_1(%arg0: i32) -> (i32, i32) {
    %c0_i32 = arith.constant 0 : i32
    %c0_i32_0 = arith.constant 0 : i32
    %c0_i32_1 = arith.constant 0 : i32
    return %c0_i32, %c0_i32_0 : i32, i32
  }
  func.func @transform_2(%arg0: i32) -> (i32, i32) {
    %c0_i32 = arith.constant 0 : i32
    %c0_i32_0 = arith.constant 0 : i32
    %c0_i32_1 = arith.constant 0 : i32
    return %c0_i32, %c0_i32_0 : i32, i32
  }
  func.func @transform_3(%arg0: i32) -> (i32, i32) {
    %c0_i32 = arith.constant 0 : i32
    %c0_i32_0 = arith.constant 0 : i32
    %c0_i32_1 = arith.constant 0 : i32
    return %c0_i32, %c0_i32_0 : i32, i32
  }
  func.func @transform_4(%arg0: i32) -> (i32, i32) {
    %c0_i32 = arith.constant 0 : i32
    %c0_i32_0 = arith.constant 0 : i32
    %c0_i32_1 = arith.constant 0 : i32
    return %c0_i32, %c0_i32_0 : i32, i32
  }
  func.func @transform_5(%arg0: i32) -> (i32, i32) {
    %c0_i32 = arith.constant 0 : i32
    %c0_i32_0 = arith.constant 0 : i32
    %c0_i32_1 = arith.constant 0 : i32
    return %c0_i32, %c0_i32_0 : i32, i32
  }
  func.func @transform_6(%arg0: i32) -> (i32, i32) {
    %c0_i32 = arith.constant 0 : i32
    %c0_i32_0 = arith.constant 0 : i32
    %c0_i32_1 = arith.constant 0 : i32
    return %c0_i32, %c0_i32_0 : i32, i32
  }
  func.func @transform_7(%arg0: i32) -> (i32, i32) {
    %c0_i32 = arith.constant 0 : i32
    %c0_i32_0 = arith.constant 0 : i32
    return %arg0, %c0_i32 : i32, i32
  }
}

module attributes {stable_mosaic.version = 11 : i64} {
  func.func @_mlp_fused_kernel(%arg0: i32, %arg1: memref<128x32xf32, #tpu.memory_space<vmem>>, %arg2: memref<32x128xbf16, #tpu.memory_space<vmem>>, %arg3: memref<1x128xf32, #tpu.memory_space<vmem>>, %arg4: memref<128x128xbf16, #tpu.memory_space<vmem>>, %arg5: memref<1x128xf32, #tpu.memory_space<vmem>>, %arg6: memref<128x128xbf16, #tpu.memory_space<vmem>>, %arg7: memref<1x128xf32, #tpu.memory_space<vmem>>, %arg8: memref<128x128xf32, #tpu.memory_space<vmem>>) attributes {dimension_semantics = [#tpu.dimension_semantics<parallel>], iteration_bounds = array<i64: 2>, scalar_prefetch = 0 : i64, scratch_operands = 0 : i64, tpu.core_type = #tpu.core_type<tc>, window_params = [{transform_indices = @transform_0, window_bounds = array<i64: 128, 32>}, {pipeline_mode = #tpu.pipeline_mode<synchronous>, transform_indices = @transform_1, window_bounds = array<i64: 32, 128>}, {pipeline_mode = #tpu.pipeline_mode<synchronous>, transform_indices = @transform_2, window_bounds = array<i64: 1, 128>}, {pipeline_mode = #tpu.pipeline_mode<synchronous>, transform_indices = @transform_3, window_bounds = array<i64: 128, 128>}, {pipeline_mode = #tpu.pipeline_mode<synchronous>, transform_indices = @transform_4, window_bounds = array<i64: 1, 128>}, {pipeline_mode = #tpu.pipeline_mode<synchronous>, transform_indices = @transform_5, window_bounds = array<i64: 128, 128>}, {pipeline_mode = #tpu.pipeline_mode<synchronous>, transform_indices = @transform_6, window_bounds = array<i64: 1, 128>}, {transform_indices = @transform_7, window_bounds = array<i64: 128, 128>}]} {
    %c0 = arith.constant 0 : index
    %c0_0 = arith.constant 0 : index
    %0 = vector.load %arg1[%c0, %c0_0] : memref<128x32xf32, #tpu.memory_space<vmem>>, vector<128x32xf32>
    %c0_1 = arith.constant 0 : index
    %c0_2 = arith.constant 0 : index
    %1 = vector.load %arg2[%c0_1, %c0_2] : memref<32x128xbf16, #tpu.memory_space<vmem>>, vector<32x128xbf16>
    %c0_3 = arith.constant 0 : index
    %c0_4 = arith.constant 0 : index
    %2 = vector.load %arg3[%c0_3, %c0_4] : memref<1x128xf32, #tpu.memory_space<vmem>>, vector<1x128xf32>
    %3 = arith.truncf %0 : vector<128x32xf32> to vector<128x32xbf16>
    %cst = arith.constant dense<0.000000e+00> : vector<128x128xf32>
    %4 = tpu.matmul %3, %1, %cst {dimension_numbers = #tpu.dot_dimension_numbers<[1], [0], [0], [1], [0, 0, 1, 1], [], []>} : vector<128x32xbf16>, vector<32x128xbf16>, vector<128x128xf32> -> vector<128x128xf32>
    %5 = vector.broadcast %2 : vector<1x128xf32> to vector<128x128xf32>
    %6 = arith.addf %4, %5 : vector<128x128xf32>
    %7 = arith.negf %6 : vector<128x128xf32>
    %8 = math.exp %7 : vector<128x128xf32>
    %cst_5 = arith.constant 1.000000e+00 : f32
    %9 = vector.broadcast %cst_5 : f32 to vector<128x128xf32>
    %10 = arith.addf %9, %8 : vector<128x128xf32>
    %11 = arith.divf %9, %10 : vector<128x128xf32>
    %12 = arith.mulf %6, %11 : vector<128x128xf32>
    %c0_6 = arith.constant 0 : index
    %c0_7 = arith.constant 0 : index
    %13 = vector.load %arg4[%c0_6, %c0_7] : memref<128x128xbf16, #tpu.memory_space<vmem>>, vector<128x128xbf16>
    %c0_8 = arith.constant 0 : index
    %c0_9 = arith.constant 0 : index
    %14 = vector.load %arg5[%c0_8, %c0_9] : memref<1x128xf32, #tpu.memory_space<vmem>>, vector<1x128xf32>
    %15 = arith.truncf %12 : vector<128x128xf32> to vector<128x128xbf16>
    %cst_10 = arith.constant dense<0.000000e+00> : vector<128x128xf32>
    %16 = tpu.matmul %15, %13, %cst_10 {dimension_numbers = #tpu.dot_dimension_numbers<[1], [0], [0], [1], [0, 0, 1, 1], [], []>} : vector<128x128xbf16>, vector<128x128xbf16>, vector<128x128xf32> -> vector<128x128xf32>
    %17 = vector.broadcast %14 : vector<1x128xf32> to vector<128x128xf32>
    %18 = arith.addf %16, %17 : vector<128x128xf32>
    %19 = arith.negf %18 : vector<128x128xf32>
    %20 = math.exp %19 : vector<128x128xf32>
    %cst_11 = arith.constant 1.000000e+00 : f32
    %21 = vector.broadcast %cst_11 : f32 to vector<128x128xf32>
    %22 = arith.addf %21, %20 : vector<128x128xf32>
    %23 = arith.divf %21, %22 : vector<128x128xf32>
    %24 = arith.mulf %18, %23 : vector<128x128xf32>
    %c0_12 = arith.constant 0 : index
    %c0_13 = arith.constant 0 : index
    %25 = vector.load %arg6[%c0_12, %c0_13] : memref<128x128xbf16, #tpu.memory_space<vmem>>, vector<128x128xbf16>
    %c0_14 = arith.constant 0 : index
    %c0_15 = arith.constant 0 : index
    %26 = vector.load %arg7[%c0_14, %c0_15] : memref<1x128xf32, #tpu.memory_space<vmem>>, vector<1x128xf32>
    %27 = arith.truncf %24 : vector<128x128xf32> to vector<128x128xbf16>
    %cst_16 = arith.constant dense<0.000000e+00> : vector<128x128xf32>
    %28 = tpu.matmul %27, %25, %cst_16 {dimension_numbers = #tpu.dot_dimension_numbers<[1], [0], [0], [1], [0, 0, 1, 1], [], []>} : vector<128x128xbf16>, vector<128x128xbf16>, vector<128x128xf32> -> vector<128x128xf32>
    %29 = vector.broadcast %26 : vector<1x128xf32> to vector<128x128xf32>
    %30 = arith.addf %28, %29 : vector<128x128xf32>
    %c0_17 = arith.constant 0 : index
    %c0_18 = arith.constant 0 : index
    %31 = vector.load %arg8[%c0_17, %c0_18] : memref<128x128xf32, #tpu.memory_space<vmem>>, vector<128x128xf32>
    tpu.vector_store %arg8[%c0_17, %c0_18], %30 {strides = array<i32>} : memref<128x128xf32, #tpu.memory_space<vmem>>, vector<128x128xf32>,
    return
  }
  func.func @transform_0(%arg0: i32) -> (i32, i32) {
    %c0_i32 = arith.constant 0 : i32
    %c0_i32_0 = arith.constant 0 : i32
    return %arg0, %c0_i32 : i32, i32
  }
  func.func @transform_1(%arg0: i32) -> (i32, i32) {
    %c0_i32 = arith.constant 0 : i32
    %c0_i32_0 = arith.constant 0 : i32
    %c0_i32_1 = arith.constant 0 : i32
    return %c0_i32, %c0_i32_0 : i32, i32
  }
  func.func @transform_2(%arg0: i32) -> (i32, i32) {
    %c0_i32 = arith.constant 0 : i32
    %c0_i32_0 = arith.constant 0 : i32
    %c0_i32_1 = arith.constant 0 : i32
    return %c0_i32, %c0_i32_0 : i32, i32
  }
  func.func @transform_3(%arg0: i32) -> (i32, i32) {
    %c0_i32 = arith.constant 0 : i32
    %c0_i32_0 = arith.constant 0 : i32
    %c0_i32_1 = arith.constant 0 : i32
    return %c0_i32, %c0_i32_0 : i32, i32
  }
  func.func @transform_4(%arg0: i32) -> (i32, i32) {
    %c0_i32 = arith.constant 0 : i32
    %c0_i32_0 = arith.constant 0 : i32
    %c0_i32_1 = arith.constant 0 : i32
    return %c0_i32, %c0_i32_0 : i32, i32
  }
  func.func @transform_5(%arg0: i32) -> (i32, i32) {
    %c0_i32 = arith.constant 0 : i32
    %c0_i32_0 = arith.constant 0 : i32
    %c0_i32_1 = arith.constant 0 : i32
    return %c0_i32, %c0_i32_0 : i32, i32
  }
  func.func @transform_6(%arg0: i32) -> (i32, i32) {
    %c0_i32 = arith.constant 0 : i32
    %c0_i32_0 = arith.constant 0 : i32
    %c0_i32_1 = arith.constant 0 : i32
    return %c0_i32, %c0_i32_0 : i32, i32
  }
  func.func @transform_7(%arg0: i32) -> (i32, i32) {
    %c0_i32 = arith.constant 0 : i32
    %c0_i32_0 = arith.constant 0 : i32
    return %arg0, %c0_i32 : i32, i32
  }
}

</mosaic_0001>

<llo_original>
// kernel: tpu_custom_call.1
$region0: #{tpu_custom_call.1}
  #allocation0 [shape = 'u32[]', space=smem, size = 0x4, offset = 0x4, fixed_abs, tag = 'smem constant byte address 0x4 - core index']
  #allocation1 [shape = 'u32[144,128]{1,0:T(1,128)}', space=vmem, size = 0x12000, scoped, tag = 'internal scratch']
  %s0 = inlined_call_operand.vmem [shape: f32[256,32], index: 0, kind: input, shape index: {}]
  %s1 = inlined_call_operand.vmem [shape: bf16[32,128], index: 1, kind: input, shape index: {}]
  %s2 = inlined_call_operand.vmem [shape: f32[1,128], index: 2, kind: input, shape index: {}]
  %s3 = inlined_call_operand.vmem [shape: bf16[128,128], index: 3, kind: input, shape index: {}]
  %s4 = inlined_call_operand.vmem [shape: f32[1,128], index: 4, kind: input, shape index: {}]
  %s5 = inlined_call_operand.vmem [shape: bf16[128,128], index: 5, kind: input, shape index: {}]
  %s6 = inlined_call_operand.vmem [shape: f32[1,128], index: 6, kind: input, shape index: {}]
  %s7 = inlined_call_operand.hbm [shape: f32[256,128], index: 7, kind: output, shape index: {}]
  %s8 = sld [smem:[#allocation0]]
  $region61: #{tpu_custom_call.1} parent=0
    _
  %s10 = ssub.s32 1, %s8
  %s11 = scalar_select 0, %s10, %s8
  $region1: #{tpu_custom_call.1} parent=0
    #allocation2 [shape = 'u8[131072]{0}', space=vmem, size = 0x20000, scoped, tag = 'output window, operand 0']
    #allocation3 [shape = 's32[2]{0}', space=sflag, size = 0x8, scoped, tag = 'scoped memory for tpu_custom_call.1']
    %12 = vsyncpa [#allocation3], 0
    %s13 = scalar_lea.sflag [#allocation3], 1
    %14 = vsyncpa %s13, 0
    loop: start=0, step=1, limit=4
    $region2: #{tpu_custom_call.1} parent=1 // loop_pre_header
      _
    $region3: #{tpu_custom_call.1} parent=1 // loop_header
      %s16 = sphi 0, %s20
      %p17 = scmp.ge.s32.totalorder %s16, 4
      %s26 = sphi 0, %s28
      %s29 = sphi 0, %s26
      %s30 = sphi 0, %s29
      %s46 = sphi 0, %s30
      %s50 = sphi 0, %s50
      %s52 = sphi 0, %s50
      %s53 = sphi 0, %s52
      %s67 = sphi 0, %s53
      %s71 = sphi 0, %s71
      %s73 = sphi 0, %s71
      %s74 = sphi 0, %s73
      %s88 = sphi 0, %s74
      %s92 = sphi 0, %s92
      %s94 = sphi 0, %s92
      %s95 = sphi 0, %s94
      %s109 = sphi 0, %s95
      %s113 = sphi 0, %s113
      %s115 = sphi 0, %s113
      %s116 = sphi 0, %s115
      %s130 = sphi 0, %s116
      %s134 = sphi 0, %s134
      %s136 = sphi 0, %s134
      %s137 = sphi 0, %s136
      %s151 = sphi 0, %s137
      %s155 = sphi 0, %s155
      %s157 = sphi 0, %s155
      %s158 = sphi 0, %s157
      %s172 = sphi 0, %s158
      %s178 = sphi 0, %s180
      %s181 = sphi 0, %s178
      %s182 = sphi 0, %s181
      %s198 = sphi 0, %s182
    $region4: #{tpu_custom_call.1} parent=1 // loop_header_branch
      %19 = sbr.rel (%p17) target = $region8
    $region5: #{tpu_custom_call.1} parent=1 // loop_body
      %s21 = ssub.s32 %s16, 1
      %s22 = ssub.s32 %s16, 2
      %s23 = sadd.s32 %s16, 1
      %s24 = ssub.s32 %s16, %s23
      %p25 = scmp.eq.s32.totalorder %s24, 0
      %s27 = sadd.s32 %s26, 1
      %s28 = scalar_select %p25, %s26, %s27
      %p31 = pneg %p25
      %p32 = scmp.eq.s32.totalorder %s16, 1
      %p33 = por %p31, %p32
      %p34 = scmp.ne.s32.totalorder %s26, %s29
      %p35 = scmp.eq.s32.totalorder %s16, 0
      %p36 = por %p34, %p35
      %p37 = scmp.ne.s32.totalorder %s26, %s29
      %p38 = scmp.eq.s32.totalorder %s21, 1
      %p39 = por %p37, %p38
      %p40 = scmp.ne.s32.totalorder %s29, %s30
      %p41 = scmp.eq.s32.totalorder %s21, 0
      %p42 = por %p40, %p41
      %p43 = scmp.ne.s32.totalorder %s29, %s30
      %p44 = scmp.eq.s32.totalorder %s22, 1
      %p45 = por %p43, %p44
      %p47 = scmp.ne.s32.totalorder %s30, %s46
      %p48 = scmp.eq.s32.totalorder %s22, 0
      %p49 = por %p47, %p48
      %s51 = sadd.s32 %s50, 1
      %p54 = scmp.eq.s32.totalorder %s16, 1
      %p55 = scmp.ne.s32.totalorder %s50, %s52
      %p56 = scmp.eq.s32.totalorder %s16, 0
      %p57 = por %p55, %p56
      %p58 = scmp.ne.s32.totalorder %s50, %s52
      %p59 = scmp.eq.s32.totalorder %s21, 1
      %p60 = por %p58, %p59
      %p61 = scmp.ne.s32.totalorder %s52, %s53
      %p62 = scmp.eq.s32.totalorder %s21, 0
      %p63 = por %p61, %p62
      %p64 = scmp.ne.s32.totalorder %s52, %s53
      %p65 = scmp.eq.s32.totalorder %s22, 1
      %p66 = por %p64, %p65
      %p68 = scmp.ne.s32.totalorder %s53, %s67
      %p69 = scmp.eq.s32.totalorder %s22, 0
      %p70 = por %p68, %p69
      %s72 = sadd.s32 %s71, 1
      %p75 = scmp.eq.s32.totalorder %s16, 1
      %p76 = scmp.ne.s32.totalorder %s71, %s73
      %p77 = scmp.eq.s32.totalorder %s16, 0
      %p78 = por %p76, %p77
      %p79 = scmp.ne.s32.totalorder %s71, %s73
      %p80 = scmp.eq.s32.totalorder %s21, 1
      %p81 = por %p79, %p80
      %p82 = scmp.ne.s32.totalorder %s73, %s74
      %p83 = scmp.eq.s32.totalorder %s21, 0
      %p84 = por %p82, %p83
      %p85 = scmp.ne.s32.totalorder %s73, %s74
      %p86 = scmp.eq.s32.totalorder %s22, 1
      %p87 = por %p85, %p86
      %p89 = scmp.ne.s32.totalorder %s74, %s88
      %p90 = scmp.eq.s32.totalorder %s22, 0
      %p91 = por %p89, %p90
      %s93 = sadd.s32 %s92, 1
      %p96 = scmp.eq.s32.totalorder %s16, 1
      %p97 = scmp.ne.s32.totalorder %s92, %s94
      %p98 = scmp.eq.s32.totalorder %s16, 0
      %p99 = por %p97, %p98
      %p100 = scmp.ne.s32.totalorder %s92, %s94
      %p101 = scmp.eq.s32.totalorder %s21, 1
      %p102 = por %p100, %p101
      %p103 = scmp.ne.s32.totalorder %s94, %s95
      %p104 = scmp.eq.s32.totalorder %s21, 0
      %p105 = por %p103, %p104
      %p106 = scmp.ne.s32.totalorder %s94, %s95
      %p107 = scmp.eq.s32.totalorder %s22, 1
      %p108 = por %p106, %p107
      %p110 = scmp.ne.s32.totalorder %s95, %s109
      %p111 = scmp.eq.s32.totalorder %s22, 0
      %p112 = por %p110, %p111
      %s114 = sadd.s32 %s113, 1
      %p117 = scmp.eq.s32.totalorder %s16, 1
      %p118 = scmp.ne.s32.totalorder %s113, %s115
      %p119 = scmp.eq.s32.totalorder %s16, 0
      %p120 = por %p118, %p119
      %p121 = scmp.ne.s32.totalorder %s113, %s115
      %p122 = scmp.eq.s32.totalorder %s21, 1
      %p123 = por %p121, %p122
      %p124 = scmp.ne.s32.totalorder %s115, %s116
      %p125 = scmp.eq.s32.totalorder %s21, 0
      %p126 = por %p124, %p125
      %p127 = scmp.ne.s32.totalorder %s115, %s116
      %p128 = scmp.eq.s32.totalorder %s22, 1
      %p129 = por %p127, %p128
      %p131 = scmp.ne.s32.totalorder %s116, %s130
      %p132 = scmp.eq.s32.totalorder %s22, 0
      %p133 = por %p131, %p132
      %s135 = sadd.s32 %s134, 1
      %p138 = scmp.eq.s32.totalorder %s16, 1
      %p139 = scmp.ne.s32.totalorder %s134, %s136
      %p140 = scmp.eq.s32.totalorder %s16, 0
      %p141 = por %p139, %p140
      %p142 = scmp.ne.s32.totalorder %s134, %s136
      %p143 = scmp.eq.s32.totalorder %s21, 1
      %p144 = por %p142, %p143
      %p145 = scmp.ne.s32.totalorder %s136, %s137
      %p146 = scmp.eq.s32.totalorder %s21, 0
      %p147 = por %p145, %p146
      %p148 = scmp.ne.s32.totalorder %s136, %s137
      %p149 = scmp.eq.s32.totalorder %s22, 1
      %p150 = por %p148, %p149
      %p152 = scmp.ne.s32.totalorder %s137, %s151
      %p153 = scmp.eq.s32.totalorder %s22, 0
      %p154 = por %p152, %p153
      %s156 = sadd.s32 %s155, 1
      %p159 = scmp.eq.s32.totalorder %s16, 1
      %p160 = scmp.ne.s32.totalorder %s155, %s157
      %p161 = scmp.eq.s32.totalorder %s16, 0
      %p162 = por %p160, %p161
      %p163 = scmp.ne.s32.totalorder %s155, %s157
      %p164 = scmp.eq.s32.totalorder %s21, 1
      %p165 = por %p163, %p164
      %p166 = scmp.ne.s32.totalorder %s157, %s158
      %p167 = scmp.eq.s32.totalorder %s21, 0
      %p168 = por %p166, %p167
      %p169 = scmp.ne.s32.totalorder %s157, %s158
      %p170 = scmp.eq.s32.totalorder %s22, 1
      %p171 = por %p169, %p170
      %p173 = scmp.ne.s32.totalorder %s158, %s172
      %p174 = scmp.eq.s32.totalorder %s22, 0
      %p175 = por %p173, %p174
      %s176 = ssub.s32 %s16, %s23
      %p177 = scmp.eq.s32.totalorder %s176, 0
      %s179 = sadd.s32 %s178, 1
      %s180 = scalar_select %p177, %s178, %s179
      %p183 = pneg %p177
      %p184 = scmp.eq.s32.totalorder %s16, 1
      %p185 = por %p183, %p184
      %p186 = scmp.ne.s32.totalorder %s178, %s181
      %p187 = scmp.eq.s32.totalorder %s16, 0
      %p188 = por %p186, %p187
      %p189 = scmp.ne.s32.totalorder %s178, %s181
      %p190 = scmp.eq.s32.totalorder %s21, 1
      %p191 = por %p189, %p190
      %p192 = scmp.ne.s32.totalorder %s181, %s182
      %p193 = scmp.eq.s32.totalorder %s21, 0
      %p194 = por %p192, %p193
      %p195 = scmp.ne.s32.totalorder %s181, %s182
      %p196 = scmp.eq.s32.totalorder %s22, 1
      %p197 = por %p195, %p196
      %p199 = scmp.ne.s32.totalorder %s182, %s198
      %p200 = scmp.eq.s32.totalorder %s22, 0
      %p201 = por %p199, %p200
      %p202 = scmp.le.s32.totalorder 1, %s16
      %p203 = scmp.lt.s32.totalorder %s16, 3
      %p204 = pnand %p202, %p203
      %p205 = pneg %p204
      // Predicated region
      $region9: #{tpu_custom_call.1} parent=5 // pred_check
        _
      $region10: #{tpu_custom_call.1} parent=5 // pred_check_branch
        %207 = sbr.rel (%p204) target = $region12
      $region11: #{tpu_custom_call.1} parent=5 // pred_region
        %s208 = ssub.s32 %s16, 1
        // Predicated region
        $region13: #{tpu_custom_call.1} parent=11 // pred_check
          %p209 = pneg %p63
        $region14: #{tpu_custom_call.1} parent=11 // pred_check_branch
          %211 = sbr.rel (%p209) target = $region16
        $region15: #{tpu_custom_call.1} parent=11 // pred_region
          _
        $region16: #{tpu_custom_call.1} parent=11 // pred_fallthru
          _
        // Predicated region
        $region17: #{tpu_custom_call.1} parent=11 // pred_check
          %p212 = pneg %p84
        $region18: #{tpu_custom_call.1} parent=11 // pred_check_branch
          %214 = sbr.rel (%p212) target = $region20
        $region19: #{tpu_custom_call.1} parent=11 // pred_region
          _
        $region20: #{tpu_custom_call.1} parent=11 // pred_fallthru
          _
        // Predicated region
        $region21: #{tpu_custom_call.1} parent=11 // pred_check
          %p215 = pneg %p105
        $region22: #{tpu_custom_call.1} parent=11 // pred_check_branch
          %217 = sbr.rel (%p215) target = $region24
        $region23: #{tpu_custom_call.1} parent=11 // pred_region
          _
        $region24: #{tpu_custom_call.1} parent=11 // pred_fallthru
          _
        // Predicated region
        $region25: #{tpu_custom_call.1} parent=11 // pred_check
          %p218 = pneg %p126
        $region26: #{tpu_custom_call.1} parent=11 // pred_check_branch
          %220 = sbr.rel (%p218) target = $region28
        $region27: #{tpu_custom_call.1} parent=11 // pred_region
          _
        $region28: #{tpu_custom_call.1} parent=11 // pred_fallthru
          _
        // Predicated region
        $region29: #{tpu_custom_call.1} parent=11 // pred_check
          %p221 = pneg %p147
        $region30: #{tpu_custom_call.1} parent=11 // pred_check_branch
          %223 = sbr.rel (%p221) target = $region32
        $region31: #{tpu_custom_call.1} parent=11 // pred_region
          _
        $region32: #{tpu_custom_call.1} parent=11 // pred_fallthru
          _
        // Predicated region
        $region33: #{tpu_custom_call.1} parent=11 // pred_check
          %p224 = pneg %p168
        $region34: #{tpu_custom_call.1} parent=11 // pred_check_branch
          %226 = sbr.rel (%p224) target = $region36
        $region35: #{tpu_custom_call.1} parent=11 // pred_region
          _
        $region36: #{tpu_custom_call.1} parent=11 // pred_fallthru
          _
      $region12: #{tpu_custom_call.1} parent=5 // pred_fallthru
        _
      %p227 = scmp.lt.s32.totalorder %s16, 2
      // Predicated region
      $region37: #{tpu_custom_call.1} parent=5 // pred_check
        %p228 = pneg %p227
      $region38: #{tpu_custom_call.1} parent=5 // pred_check_branch
        %230 = sbr.rel (%p228) target = $region40
      $region39: #{tpu_custom_call.1} parent=5 // pred_region
        // Predicated region
        $region41: #{tpu_custom_call.1} parent=39 // pred_check
          %p231 = pneg %p36
        $region42: #{tpu_custom_call.1} parent=39 // pred_check_branch
          %233 = sbr.rel (%p231) target = $region44
        $region43: #{tpu_custom_call.1} parent=39 // pred_region
          %s234 = smul.u32 16, %s16
          %p235 = scmp.lt.s32.totalorder %s234, 31
          %s236 = scalar_select %p235, %s234, 31
          %s237 = smul.addr %s236, 8
          %s238 = scalar_lea.vmem %s0, %s237
          %s239 = smul.u32 16, %s16
        $region44: #{tpu_custom_call.1} parent=39 // pred_fallthru
          _
      $region40: #{tpu_custom_call.1} parent=5 // pred_fallthru
        _
      %p240 = scmp.le.s32.totalorder 1, %s16
      %p241 = scmp.lt.s32.totalorder %s16, 3
      %p242 = pnand %p240, %p241
      %p243 = pneg %p242
      // Predicated region
      $region45: #{tpu_custom_call.1} parent=5 // pred_check
        _
      $region46: #{tpu_custom_call.1} parent=5 // pred_check_branch
        %245 = sbr.rel (%p242) target = $region48
      $region47: #{tpu_custom_call.1} parent=5 // pred_region
        %s246 = ssub.s32 %s16, 1
        %s247 = smul.u32 16, %s21
        %p248 = scmp.lt.s32.totalorder %s247, 31
        %s249 = scalar_select %p248, %s247, 31
        %s250 = smul.addr %s249, 8
        %s251 = scalar_lea.vmem %s0, %s250
        %p252 = pneg %p42
        %p253 = pneg %p39
        %p254 = pneg %p63
        %p255 = pneg %p60
        %p256 = pneg %p84
        %p257 = pneg %p81
        %p258 = pneg %p105
        %p259 = pneg %p102
        %p260 = pneg %p126
        %p261 = pneg %p123
        %p262 = pneg %p147
        %p263 = pneg %p144
        %p264 = pneg %p168
        %p265 = pneg %p165
        %p266 = pneg %p194
        %p267 = pneg %p191
        %s268 = sand.u32 %s181, 1
        %s269 = scalar_lea.sflag [#allocation3], %s268
        %s270 = sand.u32 %s181, 1
        %s271 = smul.addr %s270, 128
        %s272 = scalar_lea.vmem [#allocation2], %s271
        %s273 = smul.u32 16, %s21
        %p274 = scmp.lt.s32.totalorder %s273, 31
        %s275 = scalar_select %p274, %s273, 31
        %s276 = smul.addr %s275, 8
        %s277 = scalar_lea.vmem %s0, %s276
        %s278 = smul.u32 16, %s21
        %s279 = smul.u32 16, %s21
        %v281 = vld [vmem:[%s277] sm:$0xff]
        %v282 = vld [vmem:[%s277 + $0x8] sm:$0xff]
        %v283 = vld [vmem:[%s277 + $0x10] sm:$0xff]
        %v284 = vld [vmem:[%s277 + $0x18] sm:$0xff]
        %v285 = vld [vmem:[%s277 + $0x20] sm:$0xff]
        %v286 = vld [vmem:[%s277 + $0x28] sm:$0xff]
        %v287 = vld [vmem:[%s277 + $0x30] sm:$0xff]
        %v288 = vld [vmem:[%s277 + $0x38] sm:$0xff]
        %v289 = vld [vmem:[%s277 + $0x40] sm:$0xff]
        %v290 = vld [vmem:[%s277 + $0x48] sm:$0xff]
        %v291 = vld [vmem:[%s277 + $0x50] sm:$0xff]
        %v292 = vld [vmem:[%s277 + $0x58] sm:$0xff]
        %v293 = vld [vmem:[%s277 + $0x60] sm:$0xff]
        %v294 = vld [vmem:[%s277 + $0x68] sm:$0xff]
        %v295 = vld [vmem:[%s277 + $0x70] sm:$0xff]
        %v296 = vld [vmem:[%s277 + $0x78] sm:$0xff]
        %v297 = vld [vmem:[%s1] sm:$0xf]
        %v298 = vld [vmem:[%s1 + $0x4] sm:$0xf]
        %v299 = vld [vmem:[%s1 + $0x8] sm:$0xf]
        %v300 = vld [vmem:[%s1 + $0xc] sm:$0xf]
        %v301 = vld [vmem:[%s2] sm:$0x1]
        %v302 = vpack.c.bf16 %v282, %v281
        %v303 = vpack.c.bf16 %v284, %v283
        %v304 = vpack.c.bf16 %v286, %v285
        %v305 = vpack.c.bf16 %v288, %v287
        %v306 = vpack.c.bf16 %v290, %v289
        %v307 = vpack.c.bf16 %v292, %v291
        %v308 = vpack.c.bf16 %v294, %v293
        %v309 = vpack.c.bf16 %v296, %v295
        %v311 = vlaneseq
        %v312 = vshrl.u32 %v311, 7
        %v313 = vsub.s32 0, %v312
        %v314 = vrot.slane %v301, %v313
        %v320 = vunpack.c.l.b16 %v297
        %v321 = vunpack.c.l.b16 %v298
        %v322 = vunpack.c.l.b16 %v299
        %v323 = vunpack.c.l.b16 %v300
        %v324 = vpack.c.b16 %v321, %v320
        %v325 = vpack.c.b16 %v323, %v322
        %vm328 = vcmask 261120
        %v330 = vsel %vm328, %v302, 0
        %v333 = vsel %vm328, %v303, 0
        %v336 = vsel %vm328, %v304, 0
        %v339 = vsel %vm328, %v305, 0
        %v342 = vsel %vm328, %v306, 0
        %v345 = vsel %vm328, %v307, 0
        %v348 = vsel %vm328, %v308, 0
        %v351 = vsel %vm328, %v309, 0
        %353 = vmatprep.subr.bf16.mxu0 0
        %354 = vmatpush1.bf16.msra.mxu0 %v324
        %355 = vmatprep.subr.bf16.mxu0 0
        %356 = vmatpush1.bf16.msra.mxu0 %v325
        %357 = vmatprep.subr.bf16.mxu0 0
        %358 = vmatpush1.bf16.msra.mxu0 0
        %359 = vmatprep.subr.bf16.mxu0 0
        %360 = vmatpush1.bf16.msra.mxu0 0
        %361 = vmatprep.subr.bf16.mxu0 0
        %362 = vmatpush1.bf16.msra.mxu0 0
        %363 = vmatprep.subr.bf16.mxu0 0
        %364 = vmatpush1.bf16.msra.mxu0 0
        %365 = vmatprep.subr.bf16.mxu0 0
        %366 = vmatpush1.bf16.msra.mxu0 0
        %367 = vmatprep.subr.bf16.mxu0 0
        %368 = vmatpush1.bf16.msra.mxu0 0
        %369 = vmatprep.subr.bf16.mxu0 0
        %370 = vmatpush1.bf16.msra.mxu0 0
        %371 = vmatprep.subr.bf16.mxu0 0
        %372 = vmatpush1.bf16.msra.mxu0 0
        %373 = vmatprep.subr.bf16.mxu0 0
        %374 = vmatpush1.bf16.msra.mxu0 0
        %375 = vmatprep.subr.bf16.mxu0 0
        %376 = vmatpush1.bf16.msra.mxu0 0
        %377 = vmatprep.subr.bf16.mxu0 0
        %378 = vmatpush1.bf16.msra.mxu0 0
        %379 = vmatprep.subr.bf16.mxu0 0
        %380 = vmatpush1.bf16.msra.mxu0 0
        %381 = vmatprep.subr.bf16.mxu0 0
        %382 = vmatpush1.bf16.msra.mxu0 0
        %383 = vmatprep.subr.bf16.mxu0 0
        %384 = vmatpush1.bf16.msra.mxu0 0
        %385 = vmatprep.mubr.bf16.mxu0 0
        %386 = vmatmul.mubr.bf16.gmra.mrb[0].mxu0 %v330
        %v387 = vpop.f32.mrb[0].mxu0
        %v388 = vadd.f32 %v314, %v387
        %v389 = vpop.f32.mrb[0].mxu0
        %v390 = vpop.f32.mrb[0].mxu0
        %v391 = vadd.f32 %v314, %v390
        %v392 = vpop.f32.mrb[0].mxu0
        %393 = vmatprep.mubr.bf16.mxu0 0
        %394 = vmatmul.mubr.bf16.gmra.mrb[0].mxu0 %v333
        %v395 = vpop.f32.mrb[0].mxu0
        %v396 = vadd.f32 %v314, %v395
        %v397 = vpop.f32.mrb[0].mxu0
        %v398 = vpop.f32.mrb[0].mxu0
        %v399 = vadd.f32 %v314, %v398
        %v400 = vpop.f32.mrb[0].mxu0
        %401 = vmatprep.mubr.bf16.mxu0 0
        %402 = vmatmul.mubr.bf16.gmra.mrb[0].mxu0 %v336
        %v403 = vpop.f32.mrb[0].mxu0
        %v404 = vadd.f32 %v314, %v403
        %v405 = vpop.f32.mrb[0].mxu0
        %v406 = vpop.f32.mrb[0].mxu0
        %v407 = vadd.f32 %v314, %v406
        %v408 = vpop.f32.mrb[0].mxu0
        %409 = vmatprep.mubr.bf16.mxu0 0
        %410 = vmatmul.mubr.bf16.gmra.mrb[0].mxu0 %v339
        %v411 = vpop.f32.mrb[0].mxu0
        %v412 = vadd.f32 %v314, %v411
        %v413 = vpop.f32.mrb[0].mxu0
        %v414 = vpop.f32.mrb[0].mxu0
        %v415 = vadd.f32 %v314, %v414
        %v416 = vpop.f32.mrb[0].mxu0
        %417 = vmatprep.mubr.bf16.mxu0 0
        %418 = vmatmul.mubr.bf16.gmra.mrb[0].mxu0 %v342
        %v419 = vpop.f32.mrb[0].mxu0
        %v420 = vadd.f32 %v314, %v419
        %v421 = vpop.f32.mrb[0].mxu0
        %v422 = vpop.f32.mrb[0].mxu0
        %v423 = vadd.f32 %v314, %v422
        %v424 = vpop.f32.mrb[0].mxu0
        %425 = vmatprep.mubr.bf16.mxu0 0
        %426 = vmatmul.mubr.bf16.gmra.mrb[0].mxu0 %v345
        %v427 = vpop.f32.mrb[0].mxu0
        %v428 = vadd.f32 %v314, %v427
        %v429 = vpop.f32.mrb[0].mxu0
        %v430 = vpop.f32.mrb[0].mxu0
        %v431 = vadd.f32 %v314, %v430
        %v432 = vpop.f32.mrb[0].mxu0
        %433 = vmatprep.mubr.bf16.mxu0 0
        %434 = vmatmul.mubr.bf16.gmra.mrb[0].mxu0 %v348
        %v435 = vpop.f32.mrb[0].mxu0
        %v436 = vadd.f32 %v314, %v435
        %v437 = vpop.f32.mrb[0].mxu0
        %v438 = vpop.f32.mrb[0].mxu0
        %v439 = vadd.f32 %v314, %v438
        %v440 = vpop.f32.mrb[0].mxu0
        %441 = vmatprep.mubr.bf16.mxu0 0
        %442 = vmatmul.mubr.bf16.gmra.mrb[0].mxu0 %v351
        %v443 = vpop.f32.mrb[0].mxu0
        %v444 = vadd.f32 %v314, %v443
        %v445 = vpop.f32.mrb[0].mxu0
        %v446 = vpop.f32.mrb[0].mxu0
        %v447 = vadd.f32 %v314, %v446
        %v448 = vpop.f32.mrb[0].mxu0
        %449 = vdwg.mxu0
        %v450 = vxor.u32 %v388, 2147483648
        %v451 = vxor.u32 %v391, 2147483648
        %v452 = vxor.u32 %v396, 2147483648
        %v453 = vxor.u32 %v399, 2147483648
        %v454 = vxor.u32 %v404, 2147483648
        %v455 = vxor.u32 %v407, 2147483648
        %v456 = vxor.u32 %v412, 2147483648
        %v457 = vxor.u32 %v415, 2147483648
        %v458 = vxor.u32 %v420, 2147483648
        %v459 = vxor.u32 %v423, 2147483648
        %v460 = vxor.u32 %v428, 2147483648
        %v461 = vxor.u32 %v431, 2147483648
        %v462 = vxor.u32 %v436, 2147483648
        %v463 = vxor.u32 %v439, 2147483648
        %v464 = vxor.u32 %v444, 2147483648
        %v465 = vxor.u32 %v447, 2147483648
        %v466 = vmul.f32 %v450, 1.442695
        %v467 = vpow.pop %v466
        %v468 = vmul.f32 %v451, 1.442695
        %v469 = vpow.pop %v468
        %v470 = vmul.f32 %v452, 1.442695
        %v471 = vpow.pop %v470
        %v472 = vmul.f32 %v453, 1.442695
        %v473 = vpow.pop %v472
        %v474 = vmul.f32 %v454, 1.442695
        %v475 = vpow.pop %v474
        %v476 = vmul.f32 %v455, 1.442695
        %v477 = vpow.pop %v476
        %v478 = vmul.f32 %v456, 1.442695
        %v479 = vpow.pop %v478
        %v480 = vmul.f32 %v457, 1.442695
        %v481 = vpow.pop %v480
        %v482 = vmul.f32 %v458, 1.442695
        %v483 = vpow.pop %v482
        %v484 = vmul.f32 %v459, 1.442695
        %v485 = vpow.pop %v484
        %v486 = vmul.f32 %v460, 1.442695
        %v487 = vpow.pop %v486
        %v488 = vmul.f32 %v461, 1.442695
        %v489 = vpow.pop %v488
        %v490 = vmul.f32 %v462, 1.442695
        %v491 = vpow.pop %v490
        %v492 = vmul.f32 %v463, 1.442695
        %v493 = vpow.pop %v492
        %v494 = vmul.f32 %v464, 1.442695
        %v495 = vpow.pop %v494
        %v496 = vmul.f32 %v465, 1.442695
        %v497 = vpow.pop %v496
        %v498 = vadd.f32 %v467, 1.0
        %v499 = vadd.f32 %v469, 1.0
        %v500 = vadd.f32 %v471, 1.0
        %v501 = vadd.f32 %v473, 1.0
        %v502 = vadd.f32 %v475, 1.0
        %v503 = vadd.f32 %v477, 1.0
        %v504 = vadd.f32 %v479, 1.0
        %v505 = vadd.f32 %v481, 1.0
        %v506 = vadd.f32 %v483, 1.0
        %v507 = vadd.f32 %v485, 1.0
        %v508 = vadd.f32 %v487, 1.0
        %v509 = vadd.f32 %v489, 1.0
        %v510 = vadd.f32 %v491, 1.0
        %v511 = vadd.f32 %v493, 1.0
        %v512 = vadd.f32 %v495, 1.0
        %v513 = vadd.f32 %v497, 1.0
        %v514 = vrcp.pop %v498
        %v515 = vmul.f32 1.0, %v514
        %v516 = vrcp.pop %v499
        %v517 = vmul.f32 1.0, %v516
        %v518 = vrcp.pop %v500
        %v519 = vmul.f32 1.0, %v518
        %v520 = vrcp.pop %v501
        %v521 = vmul.f32 1.0, %v520
        %v522 = vrcp.pop %v502
        %v523 = vmul.f32 1.0, %v522
        %v524 = vrcp.pop %v503
        %v525 = vmul.f32 1.0, %v524
        %v526 = vrcp.pop %v504
        %v527 = vmul.f32 1.0, %v526
        %v528 = vrcp.pop %v505
        %v529 = vmul.f32 1.0, %v528
        %v530 = vrcp.pop %v506
        %v531 = vmul.f32 1.0, %v530
        %v532 = vrcp.pop %v507
        %v533 = vmul.f32 1.0, %v532
        %v534 = vrcp.pop %v508
        %v535 = vmul.f32 1.0, %v534
        %v536 = vrcp.pop %v509
        %v537 = vmul.f32 1.0, %v536
        %v538 = vrcp.pop %v510
        %v539 = vmul.f32 1.0, %v538
        %v540 = vrcp.pop %v511
        %v541 = vmul.f32 1.0, %v540
        %v542 = vrcp.pop %v512
        %v543 = vmul.f32 1.0, %v542
        %v544 = vrcp.pop %v513
        %v545 = vmul.f32 1.0, %v544
        %v546 = vmul.f32 %v388, %v515
        %v547 = vmul.f32 %v391, %v517
        %v548 = vmul.f32 %v396, %v519
        %v549 = vmul.f32 %v399, %v521
        %v550 = vmul.f32 %v404, %v523
        %v551 = vmul.f32 %v407, %v525
        %v552 = vmul.f32 %v412, %v527
        %v553 = vmul.f32 %v415, %v529
        %v554 = vmul.f32 %v420, %v531
        %v555 = vmul.f32 %v423, %v533
        %v556 = vmul.f32 %v428, %v535
        %v557 = vmul.f32 %v431, %v537
        %v558 = vmul.f32 %v436, %v539
        %v559 = vmul.f32 %v439, %v541
        %v560 = vmul.f32 %v444, %v543
        %v561 = vmul.f32 %v447, %v545
        %v562 = vld [vmem:[%s3] sm:$0xf]
        %v563 = vld [vmem:[%s3 + $0x4] sm:$0xf]
        %v564 = vld [vmem:[%s3 + $0x8] sm:$0xf]
        %v565 = vld [vmem:[%s3 + $0xc] sm:$0xf]
        %v566 = vld [vmem:[%s3 + $0x10] sm:$0xf]
        %v567 = vld [vmem:[%s3 + $0x14] sm:$0xf]
        %v568 = vld [vmem:[%s3 + $0x18] sm:$0xf]
        %v569 = vld [vmem:[%s3 + $0x1c] sm:$0xf]
        %v570 = vld [vmem:[%s3 + $0x20] sm:$0xf]
        %v571 = vld [vmem:[%s3 + $0x24] sm:$0xf]
        %v572 = vld [vmem:[%s3 + $0x28] sm:$0xf]
        %v573 = vld [vmem:[%s3 + $0x2c] sm:$0xf]
        %v574 = vld [vmem:[%s3 + $0x30] sm:$0xf]
        %v575 = vld [vmem:[%s3 + $0x34] sm:$0xf]
        %v576 = vld [vmem:[%s3 + $0x38] sm:$0xf]
        %v577 = vld [vmem:[%s3 + $0x3c] sm:$0xf]
        %v578 = vld [vmem:[%s4] sm:$0x1]
        %v579 = vpack.c.bf16 %v547, %v546
        %v580 = vpack.c.bf16 %v549, %v548
        %v581 = vpack.c.bf16 %v551, %v550
        %v582 = vpack.c.bf16 %v553, %v552
        %v583 = vpack.c.bf16 %v555, %v554
        %v584 = vpack.c.bf16 %v557, %v556
        %v585 = vpack.c.bf16 %v559, %v558
        %v586 = vpack.c.bf16 %v561, %v560
        %v588 = vlaneseq
        %v589 = vshrl.u32 %v588, 7
        %v590 = vsub.s32 0, %v589
        %v591 = vrot.slane %v578, %v590
        %v609 = vunpack.c.l.b16 %v562
        %v610 = vunpack.c.l.b16 %v563
        %v611 = vunpack.c.l.b16 %v564
        %v612 = vunpack.c.l.b16 %v565
        %v613 = vunpack.c.l.b16 %v566
        %v614 = vunpack.c.l.b16 %v567
        %v615 = vunpack.c.l.b16 %v568
        %v616 = vunpack.c.l.b16 %v569
        %v617 = vunpack.c.l.b16 %v570
        %v618 = vunpack.c.l.b16 %v571
        %v619 = vunpack.c.l.b16 %v572
        %v620 = vunpack.c.l.b16 %v573
        %v621 = vunpack.c.l.b16 %v574
        %v622 = vunpack.c.l.b16 %v575
        %v623 = vunpack.c.l.b16 %v576
        %v624 = vunpack.c.l.b16 %v577
        %v625 = vpack.c.b16 %v610, %v609
        %v626 = vpack.c.b16 %v612, %v611
        %v627 = vpack.c.b16 %v614, %v613
        %v628 = vpack.c.b16 %v616, %v615
        %v629 = vpack.c.b16 %v618, %v617
        %v630 = vpack.c.b16 %v620, %v619
        %v631 = vpack.c.b16 %v622, %v621
        %v632 = vpack.c.b16 %v624, %v623
        %641 = vmatprep.subr.bf16.mxu0 0
        %642 = vmatpush1.bf16.msra.mxu0 %v625
        %643 = vmatprep.subr.bf16.mxu0 0
        %644 = vmatpush1.bf16.msra.mxu0 %v626
        %645 = vmatprep.subr.bf16.mxu0 0
        %646 = vmatpush1.bf16.msra.mxu0 %v627
        %647 = vmatprep.subr.bf16.mxu0 0
        %648 = vmatpush1.bf16.msra.mxu0 %v628
        %649 = vmatprep.subr.bf16.mxu0 0
        %650 = vmatpush1.bf16.msra.mxu0 %v629
        %651 = vmatprep.subr.bf16.mxu0 0
        %652 = vmatpush1.bf16.msra.mxu0 %v630
        %653 = vmatprep.subr.bf16.mxu0 0
        %654 = vmatpush1.bf16.msra.mxu0 %v631
        %655 = vmatprep.subr.bf16.mxu0 0
        %656 = vmatpush1.bf16.msra.mxu0 %v632
        %657 = vmatprep.subr.bf16.mxu0 0
        %658 = vmatpush1.bf16.msra.mxu0 0
        %659 = vmatprep.subr.bf16.mxu0 0
        %660 = vmatpush1.bf16.msra.mxu0 0
        %661 = vmatprep.subr.bf16.mxu0 0
        %662 = vmatpush1.bf16.msra.mxu0 0
        %663 = vmatprep.subr.bf16.mxu0 0
        %664 = vmatpush1.bf16.msra.mxu0 0
        %665 = vmatprep.subr.bf16.mxu0 0
        %666 = vmatpush1.bf16.msra.mxu0 0
        %667 = vmatprep.subr.bf16.mxu0 0
        %668 = vmatpush1.bf16.msra.mxu0 0
        %669 = vmatprep.subr.bf16.mxu0 0
        %670 = vmatpush1.bf16.msra.mxu0 0
        %671 = vmatprep.subr.bf16.mxu0 0
        %672 = vmatpush1.bf16.msra.mxu0 0
        %673 = vmatprep.mubr.bf16.mxu0 0
        %674 = vmatmul.mubr.bf16.gmra.mrb[0].mxu0 %v579
        %v675 = vpop.f32.mrb[0].mxu0
        %v676 = vadd.f32 %v591, %v675
        %v677 = vpop.f32.mrb[0].mxu0
        %v678 = vpop.f32.mrb[0].mxu0
        %v679 = vadd.f32 %v591, %v678
        %v680 = vpop.f32.mrb[0].mxu0
        %681 = vmatprep.mubr.bf16.mxu0 0
        %682 = vmatmul.mubr.bf16.gmra.mrb[0].mxu0 %v580
        %v683 = vpop.f32.mrb[0].mxu0
        %v684 = vadd.f32 %v591, %v683
        %v685 = vpop.f32.mrb[0].mxu0
        %v686 = vpop.f32.mrb[0].mxu0
        %v687 = vadd.f32 %v591, %v686
        %v688 = vpop.f32.mrb[0].mxu0
        %689 = vmatprep.mubr.bf16.mxu0 0
        %690 = vmatmul.mubr.bf16.gmra.mrb[0].mxu0 %v581
        %v691 = vpop.f32.mrb[0].mxu0
        %v692 = vadd.f32 %v591, %v691
        %v693 = vpop.f32.mrb[0].mxu0
        %v694 = vpop.f32.mrb[0].mxu0
        %v695 = vadd.f32 %v591, %v694
        %v696 = vpop.f32.mrb[0].mxu0
        %697 = vmatprep.mubr.bf16.mxu0 0
        %698 = vmatmul.mubr.bf16.gmra.mrb[0].mxu0 %v582
        %v699 = vpop.f32.mrb[0].mxu0
        %v700 = vadd.f32 %v591, %v699
        %v701 = vpop.f32.mrb[0].mxu0
        %v702 = vpop.f32.mrb[0].mxu0
        %v703 = vadd.f32 %v591, %v702
        %v704 = vpop.f32.mrb[0].mxu0
        %705 = vmatprep.mubr.bf16.mxu0 0
        %706 = vmatmul.mubr.bf16.gmra.mrb[0].mxu0 %v583
        %v707 = vpop.f32.mrb[0].mxu0
        %v708 = vadd.f32 %v591, %v707
        %v709 = vpop.f32.mrb[0].mxu0
        %v710 = vpop.f32.mrb[0].mxu0
        %v711 = vadd.f32 %v591, %v710
        %v712 = vpop.f32.mrb[0].mxu0
        %713 = vmatprep.mubr.bf16.mxu0 0
        %714 = vmatmul.mubr.bf16.gmra.mrb[0].mxu0 %v584
        %v715 = vpop.f32.mrb[0].mxu0
        %v716 = vadd.f32 %v591, %v715
        %v717 = vpop.f32.mrb[0].mxu0
        %v718 = vpop.f32.mrb[0].mxu0
        %v719 = vadd.f32 %v591, %v718
        %v720 = vpop.f32.mrb[0].mxu0
        %721 = vmatprep.mubr.bf16.mxu0 0
        %722 = vmatmul.mubr.bf16.gmra.mrb[0].mxu0 %v585
        %v723 = vpop.f32.mrb[0].mxu0
        %v724 = vadd.f32 %v591, %v723
        %v725 = vpop.f32.mrb[0].mxu0
        %v726 = vpop.f32.mrb[0].mxu0
        %v727 = vadd.f32 %v591, %v726
        %v728 = vpop.f32.mrb[0].mxu0
        %729 = vmatprep.mubr.bf16.mxu0 0
        %730 = vmatmul.mubr.bf16.gmra.mrb[0].mxu0 %v586
        %v731 = vpop.f32.mrb[0].mxu0
        %v732 = vadd.f32 %v591, %v731
        %v733 = vpop.f32.mrb[0].mxu0
        %v734 = vpop.f32.mrb[0].mxu0
        %v735 = vadd.f32 %v591, %v734
        %v736 = vpop.f32.mrb[0].mxu0
        %737 = vdwg.mxu0
        %v738 = vxor.u32 %v676, 2147483648
        %v739 = vxor.u32 %v679, 2147483648
        %v740 = vxor.u32 %v684, 2147483648
        %v741 = vxor.u32 %v687, 2147483648
        %v742 = vxor.u32 %v692, 2147483648
        %v743 = vxor.u32 %v695, 2147483648
        %v744 = vxor.u32 %v700, 2147483648
        %v745 = vxor.u32 %v703, 2147483648
        %v746 = vxor.u32 %v708, 2147483648
        %v747 = vxor.u32 %v711, 2147483648
        %v748 = vxor.u32 %v716, 2147483648
        %v749 = vxor.u32 %v719, 2147483648
        %v750 = vxor.u32 %v724, 2147483648
        %v751 = vxor.u32 %v727, 2147483648
        %v752 = vxor.u32 %v732, 2147483648
        %v753 = vxor.u32 %v735, 2147483648
        %v754 = vmul.f32 %v738, 1.442695
        %v755 = vpow.pop %v754
        %v756 = vmul.f32 %v739, 1.442695
        %v757 = vpow.pop %v756
        %v758 = vmul.f32 %v740, 1.442695
        %v759 = vpow.pop %v758
        %v760 = vmul.f32 %v741, 1.442695
        %v761 = vpow.pop %v760
        %v762 = vmul.f32 %v742, 1.442695
        %v763 = vpow.pop %v762
        %v764 = vmul.f32 %v743, 1.442695
        %v765 = vpow.pop %v764
        %v766 = vmul.f32 %v744, 1.442695
        %v767 = vpow.pop %v766
        %v768 = vmul.f32 %v745, 1.442695
        %v769 = vpow.pop %v768
        %v770 = vmul.f32 %v746, 1.442695
        %v771 = vpow.pop %v770
        %v772 = vmul.f32 %v747, 1.442695
        %v773 = vpow.pop %v772
        %v774 = vmul.f32 %v748, 1.442695
        %v775 = vpow.pop %v774
        %v776 = vmul.f32 %v749, 1.442695
        %v777 = vpow.pop %v776
        %v778 = vmul.f32 %v750, 1.442695
        %v779 = vpow.pop %v778
        %v780 = vmul.f32 %v751, 1.442695
        %v781 = vpow.pop %v780
        %v782 = vmul.f32 %v752, 1.442695
        %v783 = vpow.pop %v782
        %v784 = vmul.f32 %v753, 1.442695
        %v785 = vpow.pop %v784
        %v786 = vadd.f32 %v755, 1.0
        %v787 = vadd.f32 %v757, 1.0
        %v788 = vadd.f32 %v759, 1.0
        %v789 = vadd.f32 %v761, 1.0
        %v790 = vadd.f32 %v763, 1.0
        %v791 = vadd.f32 %v765, 1.0
        %v792 = vadd.f32 %v767, 1.0
        %v793 = vadd.f32 %v769, 1.0
        %v794 = vadd.f32 %v771, 1.0
        %v795 = vadd.f32 %v773, 1.0
        %v796 = vadd.f32 %v775, 1.0
        %v797 = vadd.f32 %v777, 1.0
        %v798 = vadd.f32 %v779, 1.0
        %v799 = vadd.f32 %v781, 1.0
        %v800 = vadd.f32 %v783, 1.0
        %v801 = vadd.f32 %v785, 1.0
        %v802 = vrcp.pop %v786
        %v803 = vmul.f32 1.0, %v802
        %v804 = vrcp.pop %v787
        %v805 = vmul.f32 1.0, %v804
        %v806 = vrcp.pop %v788
        %v807 = vmul.f32 1.0, %v806
        %v808 = vrcp.pop %v789
        %v809 = vmul.f32 1.0, %v808
        %v810 = vrcp.pop %v790
        %v811 = vmul.f32 1.0, %v810
        %v812 = vrcp.pop %v791
        %v813 = vmul.f32 1.0, %v812
        %v814 = vrcp.pop %v792
        %v815 = vmul.f32 1.0, %v814
        %v816 = vrcp.pop %v793
        %v817 = vmul.f32 1.0, %v816
        %v818 = vrcp.pop %v794
        %v819 = vmul.f32 1.0, %v818
        %v820 = vrcp.pop %v795
        %v821 = vmul.f32 1.0, %v820
        %v822 = vrcp.pop %v796
        %v823 = vmul.f32 1.0, %v822
        %v824 = vrcp.pop %v797
        %v825 = vmul.f32 1.0, %v824
        %v826 = vrcp.pop %v798
        %v827 = vmul.f32 1.0, %v826
        %v828 = vrcp.pop %v799
        %v829 = vmul.f32 1.0, %v828
        %v830 = vrcp.pop %v800
        %v831 = vmul.f32 1.0, %v830
        %v832 = vrcp.pop %v801
        %v833 = vmul.f32 1.0, %v832
        %v834 = vmul.f32 %v676, %v803
        %v835 = vmul.f32 %v679, %v805
        %v836 = vmul.f32 %v684, %v807
        %v837 = vmul.f32 %v687, %v809
        %v838 = vmul.f32 %v692, %v811
        %v839 = vmul.f32 %v695, %v813
        %v840 = vmul.f32 %v700, %v815
        %v841 = vmul.f32 %v703, %v817
        %v842 = vmul.f32 %v708, %v819
        %v843 = vmul.f32 %v711, %v821
        %v844 = vmul.f32 %v716, %v823
        %v845 = vmul.f32 %v719, %v825
        %v846 = vmul.f32 %v724, %v827
        %v847 = vmul.f32 %v727, %v829
        %v848 = vmul.f32 %v732, %v831
        %v849 = vmul.f32 %v735, %v833
        %v850 = vld [vmem:[%s5] sm:$0xf]
        %v851 = vld [vmem:[%s5 + $0x4] sm:$0xf]
        %v852 = vld [vmem:[%s5 + $0x8] sm:$0xf]
        %v853 = vld [vmem:[%s5 + $0xc] sm:$0xf]
        %v854 = vld [vmem:[%s5 + $0x10] sm:$0xf]
        %v855 = vld [vmem:[%s5 + $0x14] sm:$0xf]
        %v856 = vld [vmem:[%s5 + $0x18] sm:$0xf]
        %v857 = vld [vmem:[%s5 + $0x1c] sm:$0xf]
        %v858 = vld [vmem:[%s5 + $0x20] sm:$0xf]
        %v859 = vld [vmem:[%s5 + $0x24] sm:$0xf]
        %v860 = vld [vmem:[%s5 + $0x28] sm:$0xf]
        %v861 = vld [vmem:[%s5 + $0x2c] sm:$0xf]
        %v862 = vld [vmem:[%s5 + $0x30] sm:$0xf]
        %v863 = vld [vmem:[%s5 + $0x34] sm:$0xf]
        %v864 = vld [vmem:[%s5 + $0x38] sm:$0xf]
        %v865 = vld [vmem:[%s5 + $0x3c] sm:$0xf]
        %v866 = vld [vmem:[%s6] sm:$0x1]
        %v867 = vpack.c.bf16 %v835, %v834
        %v868 = vpack.c.bf16 %v837, %v836
        %v869 = vpack.c.bf16 %v839, %v838
        %v870 = vpack.c.bf16 %v841, %v840
        %v871 = vpack.c.bf16 %v843, %v842
        %v872 = vpack.c.bf16 %v845, %v844
        %v873 = vpack.c.bf16 %v847, %v846
        %v874 = vpack.c.bf16 %v849, %v848
        %v876 = vlaneseq
        %v877 = vshrl.u32 %v876, 7
        %v878 = vsub.s32 0, %v877
        %v879 = vrot.slane %v866, %v878
        %v897 = vunpack.c.l.b16 %v850
        %v898 = vunpack.c.l.b16 %v851
        %v899 = vunpack.c.l.b16 %v852
        %v900 = vunpack.c.l.b16 %v853
        %v901 = vunpack.c.l.b16 %v854
        %v902 = vunpack.c.l.b16 %v855
        %v903 = vunpack.c.l.b16 %v856
        %v904 = vunpack.c.l.b16 %v857
        %v905 = vunpack.c.l.b16 %v858
        %v906 = vunpack.c.l.b16 %v859
        %v907 = vunpack.c.l.b16 %v860
        %v908 = vunpack.c.l.b16 %v861
        %v909 = vunpack.c.l.b16 %v862
        %v910 = vunpack.c.l.b16 %v863
        %v911 = vunpack.c.l.b16 %v864
        %v912 = vunpack.c.l.b16 %v865
        %v913 = vpack.c.b16 %v898, %v897
        %v914 = vpack.c.b16 %v900, %v899
        %v915 = vpack.c.b16 %v902, %v901
        %v916 = vpack.c.b16 %v904, %v903
        %v917 = vpack.c.b16 %v906, %v905
        %v918 = vpack.c.b16 %v908, %v907
        %v919 = vpack.c.b16 %v910, %v909
        %v920 = vpack.c.b16 %v912, %v911
        %929 = vmatprep.subr.bf16.mxu0 0
        %930 = vmatpush1.bf16.msra.mxu0 %v913
        %931 = vmatprep.subr.bf16.mxu0 0
        %932 = vmatpush1.bf16.msra.mxu0 %v914
        %933 = vmatprep.subr.bf16.mxu0 0
        %934 = vmatpush1.bf16.msra.mxu0 %v915
        %935 = vmatprep.subr.bf16.mxu0 0
        %936 = vmatpush1.bf16.msra.mxu0 %v916
        %937 = vmatprep.subr.bf16.mxu0 0
        %938 = vmatpush1.bf16.msra.mxu0 %v917
        %939 = vmatprep.subr.bf16.mxu0 0
        %940 = vmatpush1.bf16.msra.mxu0 %v918
        %941 = vmatprep.subr.bf16.mxu0 0
        %942 = vmatpush1.bf16.msra.mxu0 %v919
        %943 = vmatprep.subr.bf16.mxu0 0
        %944 = vmatpush1.bf16.msra.mxu0 %v920
        %945 = vmatprep.subr.bf16.mxu0 0
        %946 = vmatpush1.bf16.msra.mxu0 0
        %947 = vmatprep.subr.bf16.mxu0 0
        %948 = vmatpush1.bf16.msra.mxu0 0
        %949 = vmatprep.subr.bf16.mxu0 0
        %950 = vmatpush1.bf16.msra.mxu0 0
        %951 = vmatprep.subr.bf16.mxu0 0
        %952 = vmatpush1.bf16.msra.mxu0 0
        %953 = vmatprep.subr.bf16.mxu0 0
        %954 = vmatpush1.bf16.msra.mxu0 0
        %955 = vmatprep.subr.bf16.mxu0 0
        %956 = vmatpush1.bf16.msra.mxu0 0
        %957 = vmatprep.subr.bf16.mxu0 0
        %958 = vmatpush1.bf16.msra.mxu0 0
        %959 = vmatprep.subr.bf16.mxu0 0
        %960 = vmatpush1.bf16.msra.mxu0 0
        %961 = vmatprep.mubr.bf16.mxu0 0
        %962 = vmatmul.mubr.bf16.gmra.mrb[0].mxu0 %v867
        %v963 = vpop.f32.mrb[0].mxu0
        %v964 = vadd.f32 %v879, %v963
        %v965 = vpop.f32.mrb[0].mxu0
        %v966 = vpop.f32.mrb[0].mxu0
        %v967 = vadd.f32 %v879, %v966
        %v968 = vpop.f32.mrb[0].mxu0
        %969 = vmatprep.mubr.bf16.mxu0 0
        %970 = vmatmul.mubr.bf16.gmra.mrb[0].mxu0 %v868
        %v971 = vpop.f32.mrb[0].mxu0
        %v972 = vadd.f32 %v879, %v971
        %v973 = vpop.f32.mrb[0].mxu0
        %v974 = vpop.f32.mrb[0].mxu0
        %v975 = vadd.f32 %v879, %v974
        %v976 = vpop.f32.mrb[0].mxu0
        %977 = vmatprep.mubr.bf16.mxu0 0
        %978 = vmatmul.mubr.bf16.gmra.mrb[0].mxu0 %v869
        %v979 = vpop.f32.mrb[0].mxu0
        %v980 = vadd.f32 %v879, %v979
        %v981 = vpop.f32.mrb[0].mxu0
        %v982 = vpop.f32.mrb[0].mxu0
        %v983 = vadd.f32 %v879, %v982
        %v984 = vpop.f32.mrb[0].mxu0
        %985 = vmatprep.mubr.bf16.mxu0 0
        %986 = vmatmul.mubr.bf16.gmra.mrb[0].mxu0 %v870
        %v987 = vpop.f32.mrb[0].mxu0
        %v988 = vadd.f32 %v879, %v987
        %v989 = vpop.f32.mrb[0].mxu0
        %v990 = vpop.f32.mrb[0].mxu0
        %v991 = vadd.f32 %v879, %v990
        %v992 = vpop.f32.mrb[0].mxu0
        %993 = vmatprep.mubr.bf16.mxu0 0
        %994 = vmatmul.mubr.bf16.gmra.mrb[0].mxu0 %v871
        %v995 = vpop.f32.mrb[0].mxu0
        %v996 = vadd.f32 %v879, %v995
        %v997 = vpop.f32.mrb[0].mxu0
        %v998 = vpop.f32.mrb[0].mxu0
        %v999 = vadd.f32 %v879, %v998
        %v1000 = vpop.f32.mrb[0].mxu0
        %1001 = vmatprep.mubr.bf16.mxu0 0
        %1002 = vmatmul.mubr.bf16.gmra.mrb[0].mxu0 %v872
        %v1003 = vpop.f32.mrb[0].mxu0
        %v1004 = vadd.f32 %v879, %v1003
        %v1005 = vpop.f32.mrb[0].mxu0
        %v1006 = vpop.f32.mrb[0].mxu0
        %v1007 = vadd.f32 %v879, %v1006
        %v1008 = vpop.f32.mrb[0].mxu0
        %1009 = vmatprep.mubr.bf16.mxu0 0
        %1010 = vmatmul.mubr.bf16.gmra.mrb[0].mxu0 %v873
        %v1011 = vpop.f32.mrb[0].mxu0
        %v1012 = vadd.f32 %v879, %v1011
        %v1013 = vpop.f32.mrb[0].mxu0
        %v1014 = vpop.f32.mrb[0].mxu0
        %v1015 = vadd.f32 %v879, %v1014
        %v1016 = vpop.f32.mrb[0].mxu0
        %1017 = vmatprep.mubr.bf16.mxu0 0
        %1018 = vmatmul.mubr.bf16.gmra.mrb[0].mxu0 %v874
        %v1019 = vpop.f32.mrb[0].mxu0
        %v1020 = vadd.f32 %v879, %v1019
        %v1021 = vpop.f32.mrb[0].mxu0
        %v1022 = vpop.f32.mrb[0].mxu0
        %v1023 = vadd.f32 %v879, %v1022
        %v1024 = vpop.f32.mrb[0].mxu0
        %1025 = vdwg.mxu0
        %1026 = vst [vmem:[%s272] sm:$0xff] %v964
        %1027 = vst [vmem:[%s272 + $0x8] sm:$0xff] %v967
        %1028 = vst [vmem:[%s272 + $0x10] sm:$0xff] %v972
        %1029 = vst [vmem:[%s272 + $0x18] sm:$0xff] %v975
        %1030 = vst [vmem:[%s272 + $0x20] sm:$0xff] %v980
        %1031 = vst [vmem:[%s272 + $0x28] sm:$0xff] %v983
        %1032 = vst [vmem:[%s272 + $0x30] sm:$0xff] %v988
        %1033 = vst [vmem:[%s272 + $0x38] sm:$0xff] %v991
        %1034 = vst [vmem:[%s272 + $0x40] sm:$0xff] %v996
        %1035 = vst [vmem:[%s272 + $0x48] sm:$0xff] %v999
        %1036 = vst [vmem:[%s272 + $0x50] sm:$0xff] %v1004
        %1037 = vst [vmem:[%s272 + $0x58] sm:$0xff] %v1007
        %1038 = vst [vmem:[%s272 + $0x60] sm:$0xff] %v1012
        %1039 = vst [vmem:[%s272 + $0x68] sm:$0xff] %v1015
        %1040 = vst [vmem:[%s272 + $0x70] sm:$0xff] %v1020
        %1041 = vst [vmem:[%s272 + $0x78] sm:$0xff] %v1023
        %s1042 = sand.u32 %s181, 1
        %s1043 = scalar_lea.sflag [#allocation3], %s1042
        %s1044 = sand.u32 %s181, 1
        %s1045 = smul.addr %s1044, 128
        %s1046 = scalar_lea.vmem [#allocation2], %s1045
        // Predicated region
        $region49: #{tpu_custom_call.1} parent=47 // pred_check
          %p1047 = pneg %p191
        $region50: #{tpu_custom_call.1} parent=47 // pred_check_branch
          %1049 = sbr.rel (%p1047) target = $region52
        $region51: #{tpu_custom_call.1} parent=47 // pred_region
          %s1050 = smul.u32 16, %s21
          %s1052 = ssub.s32 2048, 2048
          %1053 = vsyncadd %s1043, %s1052
          %s1054 = smul.addr %s1050, 128
          %s1055 = scalar_lea.hbm %s7, %s1054
          %s1056 = sshll.u32 %s1046, 4
          %s1057 = int_to_ptr.vmem [resolvable:$true] %s1056
          %1062 = dma.vmem_to_hbm [thread:$0]  %s1057, 2048, %s1055, %s1043, 128, 128, 8
        $region52: #{tpu_custom_call.1} parent=47 // pred_fallthru
          _
      $region48: #{tpu_custom_call.1} parent=5 // pred_fallthru
        _
      %p1063 = scmp.le.s32.totalorder 2, %s16
      // Predicated region
      $region53: #{tpu_custom_call.1} parent=5 // pred_check
        %p1064 = pneg %p1063
      $region54: #{tpu_custom_call.1} parent=5 // pred_check_branch
        %1066 = sbr.rel (%p1064) target = $region56
      $region55: #{tpu_custom_call.1} parent=5 // pred_region
        %s1067 = ssub.s32 %s16, 2
        // Predicated region
        $region57: #{tpu_custom_call.1} parent=55 // pred_check
          %p1068 = pneg %p197
        $region58: #{tpu_custom_call.1} parent=55 // pred_check_branch
          %1070 = sbr.rel (%p1068) target = $region60
        $region59: #{tpu_custom_call.1} parent=55 // pred_region
          %s1071 = sand.u32 %s182, 1
          %s1072 = scalar_lea.sflag [#allocation3], %s1071
          %s1073 = sand.u32 %s182, 1
          %s1074 = smul.addr %s1073, 128
          %s1075 = scalar_lea.vmem [#allocation2], %s1074
          %1076 = dma.done %s1072, 2048
        $region60: #{tpu_custom_call.1} parent=55 // pred_fallthru
          _
      $region56: #{tpu_custom_call.1} parent=5 // pred_fallthru
        _
    $region6: #{tpu_custom_call.1} parent=1 // loop_footer
      %s20 = sadd.s32 1, %s16
    $region7: #{tpu_custom_call.1} parent=1 // loop_footer_branch
      %15 = sbr.rel target = $region3
    $region8: #{tpu_custom_call.1} parent=1 // loop_exit
      _
    %1077 = vsyncpa [#allocation3], 1
    %s1078 = scalar_lea.sflag [#allocation3], 1
    %1079 = vsyncpa %s1078, 1

// kernel: tpu_custom_call.1
$region0: #{tpu_custom_call.1}
  #allocation0 [shape = 'u32[]', space=smem, size = 0x4, offset = 0x4, fixed_abs, tag = 'smem constant byte address 0x4 - core index']
  #allocation1 [shape = 'u32[144,128]{1,0:T(1,128)}', space=vmem, size = 0x12000, scoped, tag = 'internal scratch']
  %s0 = inlined_call_operand.vmem [shape: f32[256,32], index: 0, kind: input, shape index: {}]
  %s1 = inlined_call_operand.vmem [shape: bf16[32,128], index: 1, kind: input, shape index: {}]
  %s2 = inlined_call_operand.vmem [shape: f32[1,128], index: 2, kind: input, shape index: {}]
  %s3 = inlined_call_operand.vmem [shape: bf16[128,128], index: 3, kind: input, shape index: {}]
  %s4 = inlined_call_operand.vmem [shape: f32[1,128], index: 4, kind: input, shape index: {}]
  %s5 = inlined_call_operand.vmem [shape: bf16[128,128], index: 5, kind: input, shape index: {}]
  %s6 = inlined_call_operand.vmem [shape: f32[1,128], index: 6, kind: input, shape index: {}]
  %s7 = inlined_call_operand.hbm [shape: f32[256,128], index: 7, kind: output, shape index: {}]
  %s8 = sld [smem:[#allocation0]]
  $region61: #{tpu_custom_call.1} parent=0
    _
  %s10 = ssub.s32 1, %s8
  %s11 = scalar_select 0, %s10, %s8
  $region1: #{tpu_custom_call.1} parent=0
    #allocation2 [shape = 'u8[131072]{0}', space=vmem, size = 0x20000, scoped, tag = 'output window, operand 0']
    #allocation3 [shape = 's32[2]{0}', space=sflag, size = 0x8, scoped, tag = 'scoped memory for tpu_custom_call.1']
    %12 = vsyncpa [#allocation3], 0
    %s13 = scalar_lea.sflag [#allocation3], 1
    %14 = vsyncpa %s13, 0
    loop: start=0, step=1, limit=4
    $region2: #{tpu_custom_call.1} parent=1 // loop_pre_header
      _
    $region3: #{tpu_custom_call.1} parent=1 // loop_header
      %s16 = sphi 0, %s20
      %p17 = scmp.ge.s32.totalorder %s16, 4
      %s26 = sphi 0, %s28
      %s29 = sphi 0, %s26
      %s30 = sphi 0, %s29
      %s46 = sphi 0, %s30
      %s50 = sphi 0, %s50
      %s52 = sphi 0, %s50
      %s53 = sphi 0, %s52
      %s67 = sphi 0, %s53
      %s71 = sphi 0, %s71
      %s73 = sphi 0, %s71
      %s74 = sphi 0, %s73
      %s88 = sphi 0, %s74
      %s92 = sphi 0, %s92
      %s94 = sphi 0, %s92
      %s95 = sphi 0, %s94
      %s109 = sphi 0, %s95
      %s113 = sphi 0, %s113
      %s115 = sphi 0, %s113
      %s116 = sphi 0, %s115
      %s130 = sphi 0, %s116
      %s134 = sphi 0, %s134
      %s136 = sphi 0, %s134
      %s137 = sphi 0, %s136
      %s151 = sphi 0, %s137
      %s155 = sphi 0, %s155
      %s157 = sphi 0, %s155
      %s158 = sphi 0, %s157
      %s172 = sphi 0, %s158
      %s178 = sphi 0, %s180
      %s181 = sphi 0, %s178
      %s182 = sphi 0, %s181
      %s198 = sphi 0, %s182
    $region4: #{tpu_custom_call.1} parent=1 // loop_header_branch
      %19 = sbr.rel (%p17) target = $region8
    $region5: #{tpu_custom_call.1} parent=1 // loop_body
      %s21 = ssub.s32 %s16, 1
      %s22 = ssub.s32 %s16, 2
      %s23 = sadd.s32 %s16, 1
      %s24 = ssub.s32 %s16, %s23
      %p25 = scmp.eq.s32.totalorder %s24, 0
      %s27 = sadd.s32 %s26, 1
      %s28 = scalar_select %p25, %s26, %s27
      %p31 = pneg %p25
      %p32 = scmp.eq.s32.totalorder %s16, 1
      %p33 = por %p31, %p32
      %p34 = scmp.ne.s32.totalorder %s26, %s29
      %p35 = scmp.eq.s32.totalorder %s16, 0
      %p36 = por %p34, %p35
      %p37 = scmp.ne.s32.totalorder %s26, %s29
      %p38 = scmp.eq.s32.totalorder %s21, 1
      %p39 = por %p37, %p38
      %p40 = scmp.ne.s32.totalorder %s29, %s30
      %p41 = scmp.eq.s32.totalorder %s21, 0
      %p42 = por %p40, %p41
      %p43 = scmp.ne.s32.totalorder %s29, %s30
      %p44 = scmp.eq.s32.totalorder %s22, 1
      %p45 = por %p43, %p44
      %p47 = scmp.ne.s32.totalorder %s30, %s46
      %p48 = scmp.eq.s32.totalorder %s22, 0
      %p49 = por %p47, %p48
      %s51 = sadd.s32 %s50, 1
      %p54 = scmp.eq.s32.totalorder %s16, 1
      %p55 = scmp.ne.s32.totalorder %s50, %s52
      %p56 = scmp.eq.s32.totalorder %s16, 0
      %p57 = por %p55, %p56
      %p58 = scmp.ne.s32.totalorder %s50, %s52
      %p59 = scmp.eq.s32.totalorder %s21, 1
      %p60 = por %p58, %p59
      %p61 = scmp.ne.s32.totalorder %s52, %s53
      %p62 = scmp.eq.s32.totalorder %s21, 0
      %p63 = por %p61, %p62
      %p64 = scmp.ne.s32.totalorder %s52, %s53
      %p65 = scmp.eq.s32.totalorder %s22, 1
      %p66 = por %p64, %p65
      %p68 = scmp.ne.s32.totalorder %s53, %s67
      %p69 = scmp.eq.s32.totalorder %s22, 0
      %p70 = por %p68, %p69
      %s72 = sadd.s32 %s71, 1
      %p75 = scmp.eq.s32.totalorder %s16, 1
      %p76 = scmp.ne.s32.totalorder %s71, %s73
      %p77 = scmp.eq.s32.totalorder %s16, 0
      %p78 = por %p76, %p77
      %p79 = scmp.ne.s32.totalorder %s71, %s73
      %p80 = scmp.eq.s32.totalorder %s21, 1
      %p81 = por %p79, %p80
      %p82 = scmp.ne.s32.totalorder %s73, %s74
      %p83 = scmp.eq.s32.totalorder %s21, 0
      %p84 = por %p82, %p83
      %p85 = scmp.ne.s32.totalorder %s73, %s74
      %p86 = scmp.eq.s32.totalorder %s22, 1
      %p87 = por %p85, %p86
      %p89 = scmp.ne.s32.totalorder %s74, %s88
      %p90 = scmp.eq.s32.totalorder %s22, 0
      %p91 = por %p89, %p90
      %s93 = sadd.s32 %s92, 1
      %p96 = scmp.eq.s32.totalorder %s16, 1
      %p97 = scmp.ne.s32.totalorder %s92, %s94
      %p98 = scmp.eq.s32.totalorder %s16, 0
      %p99 = por %p97, %p98
      %p100 = scmp.ne.s32.totalorder %s92, %s94
      %p101 = scmp.eq.s32.totalorder %s21, 1
      %p102 = por %p100, %p101
      %p103 = scmp.ne.s32.totalorder %s94, %s95
      %p104 = scmp.eq.s32.totalorder %s21, 0
      %p105 = por %p103, %p104
      %p106 = scmp.ne.s32.totalorder %s94, %s95
      %p107 = scmp.eq.s32.totalorder %s22, 1
      %p108 = por %p106, %p107
      %p110 = scmp.ne.s32.totalorder %s95, %s109
      %p111 = scmp.eq.s32.totalorder %s22, 0
      %p112 = por %p110, %p111
      %s114 = sadd.s32 %s113, 1
      %p117 = scmp.eq.s32.totalorder %s16, 1
      %p118 = scmp.ne.s32.totalorder %s113, %s115
      %p119 = scmp.eq.s32.totalorder %s16, 0
      %p120 = por %p118, %p119
      %p121 = scmp.ne.s32.totalorder %s113, %s115
      %p122 = scmp.eq.s32.totalorder %s21, 1
      %p123 = por %p121, %p122
      %p124 = scmp.ne.s32.totalorder %s115, %s116
      %p125 = scmp.eq.s32.totalorder %s21, 0
      %p126 = por %p124, %p125
      %p127 = scmp.ne.s32.totalorder %s115, %s116
      %p128 = scmp.eq.s32.totalorder %s22, 1
      %p129 = por %p127, %p128
      %p131 = scmp.ne.s32.totalorder %s116, %s130
      %p132 = scmp.eq.s32.totalorder %s22, 0
      %p133 = por %p131, %p132
      %s135 = sadd.s32 %s134, 1
      %p138 = scmp.eq.s32.totalorder %s16, 1
      %p139 = scmp.ne.s32.totalorder %s134, %s136
      %p140 = scmp.eq.s32.totalorder %s16, 0
      %p141 = por %p139, %p140
      %p142 = scmp.ne.s32.totalorder %s134, %s136
      %p143 = scmp.eq.s32.totalorder %s21, 1
      %p144 = por %p142, %p143
      %p145 = scmp.ne.s32.totalorder %s136, %s137
      %p146 = scmp.eq.s32.totalorder %s21, 0
      %p147 = por %p145, %p146
      %p148 = scmp.ne.s32.totalorder %s136, %s137
      %p149 = scmp.eq.s32.totalorder %s22, 1
      %p150 = por %p148, %p149
      %p152 = scmp.ne.s32.totalorder %s137, %s151
      %p153 = scmp.eq.s32.totalorder %s22, 0
      %p154 = por %p152, %p153
      %s156 = sadd.s32 %s155, 1
      %p159 = scmp.eq.s32.totalorder %s16, 1
      %p160 = scmp.ne.s32.totalorder %s155, %s157
      %p161 = scmp.eq.s32.totalorder %s16, 0
      %p162 = por %p160, %p161
      %p163 = scmp.ne.s32.totalorder %s155, %s157
      %p164 = scmp.eq.s32.totalorder %s21, 1
      %p165 = por %p163, %p164
      %p166 = scmp.ne.s32.totalorder %s157, %s158
      %p167 = scmp.eq.s32.totalorder %s21, 0
      %p168 = por %p166, %p167
      %p169 = scmp.ne.s32.totalorder %s157, %s158
      %p170 = scmp.eq.s32.totalorder %s22, 1
      %p171 = por %p169, %p170
      %p173 = scmp.ne.s32.totalorder %s158, %s172
      %p174 = scmp.eq.s32.totalorder %s22, 0
      %p175 = por %p173, %p174
      %s176 = ssub.s32 %s16, %s23
      %p177 = scmp.eq.s32.totalorder %s176, 0
      %s179 = sadd.s32 %s178, 1
      %s180 = scalar_select %p177, %s178, %s179
      %p183 = pneg %p177
      %p184 = scmp.eq.s32.totalorder %s16, 1
      %p185 = por %p183, %p184
      %p186 = scmp.ne.s32.totalorder %s178, %s181
      %p187 = scmp.eq.s32.totalorder %s16, 0
      %p188 = por %p186, %p187
      %p189 = scmp.ne.s32.totalorder %s178, %s181
      %p190 = scmp.eq.s32.totalorder %s21, 1
      %p191 = por %p189, %p190
      %p192 = scmp.ne.s32.totalorder %s181, %s182
      %p193 = scmp.eq.s32.totalorder %s21, 0
      %p194 = por %p192, %p193
      %p195 = scmp.ne.s32.totalorder %s181, %s182
      %p196 = scmp.eq.s32.totalorder %s22, 1
      %p197 = por %p195, %p196
      %p199 = scmp.ne.s32.totalorder %s182, %s198
      %p200 = scmp.eq.s32.totalorder %s22, 0
      %p201 = por %p199, %p200
      %p202 = scmp.le.s32.totalorder 1, %s16
      %p203 = scmp.lt.s32.totalorder %s16, 3
      %p204 = pnand %p202, %p203
      %p205 = pneg %p204
      // Predicated region
      $region9: #{tpu_custom_call.1} parent=5 // pred_check
        _
      $region10: #{tpu_custom_call.1} parent=5 // pred_check_branch
        %207 = sbr.rel (%p204) target = $region12
      $region11: #{tpu_custom_call.1} parent=5 // pred_region
        %s208 = ssub.s32 %s16, 1
        // Predicated region
        $region13: #{tpu_custom_call.1} parent=11 // pred_check
          %p209 = pneg %p63
        $region14: #{tpu_custom_call.1} parent=11 // pred_check_branch
          %211 = sbr.rel (%p209) target = $region16
        $region15: #{tpu_custom_call.1} parent=11 // pred_region
          _
        $region16: #{tpu_custom_call.1} parent=11 // pred_fallthru
          _
        // Predicated region
        $region17: #{tpu_custom_call.1} parent=11 // pred_check
          %p212 = pneg %p84
        $region18: #{tpu_custom_call.1} parent=11 // pred_check_branch
          %214 = sbr.rel (%p212) target = $region20
        $region19: #{tpu_custom_call.1} parent=11 // pred_region
          _
        $region20: #{tpu_custom_call.1} parent=11 // pred_fallthru
          _
        // Predicated region
        $region21: #{tpu_custom_call.1} parent=11 // pred_check
          %p215 = pneg %p105
        $region22: #{tpu_custom_call.1} parent=11 // pred_check_branch
          %217 = sbr.rel (%p215) target = $region24
        $region23: #{tpu_custom_call.1} parent=11 // pred_region
          _
        $region24: #{tpu_custom_call.1} parent=11 // pred_fallthru
          _
        // Predicated region
        $region25: #{tpu_custom_call.1} parent=11 // pred_check
          %p218 = pneg %p126
        $region26: #{tpu_custom_call.1} parent=11 // pred_check_branch
          %220 = sbr.rel (%p218) target = $region28
        $region27: #{tpu_custom_call.1} parent=11 // pred_region
          _
        $region28: #{tpu_custom_call.1} parent=11 // pred_fallthru
          _
        // Predicated region
        $region29: #{tpu_custom_call.1} parent=11 // pred_check
          %p221 = pneg %p147
        $region30: #{tpu_custom_call.1} parent=11 // pred_check_branch
          %223 = sbr.rel (%p221) target = $region32
        $region31: #{tpu_custom_call.1} parent=11 // pred_region
          _
        $region32: #{tpu_custom_call.1} parent=11 // pred_fallthru
          _
        // Predicated region
        $region33: #{tpu_custom_call.1} parent=11 // pred_check
          %p224 = pneg %p168
        $region34: #{tpu_custom_call.1} parent=11 // pred_check_branch
          %226 = sbr.rel (%p224) target = $region36
        $region35: #{tpu_custom_call.1} parent=11 // pred_region
          _
        $region36: #{tpu_custom_call.1} parent=11 // pred_fallthru
          _
      $region12: #{tpu_custom_call.1} parent=5 // pred_fallthru
        _
      %p227 = scmp.lt.s32.totalorder %s16, 2
      // Predicated region
      $region37: #{tpu_custom_call.1} parent=5 // pred_check
        %p228 = pneg %p227
      $region38: #{tpu_custom_call.1} parent=5 // pred_check_branch
        %230 = sbr.rel (%p228) target = $region40
      $region39: #{tpu_custom_call.1} parent=5 // pred_region
        // Predicated region
        $region41: #{tpu_custom_call.1} parent=39 // pred_check
          %p231 = pneg %p36
        $region42: #{tpu_custom_call.1} parent=39 // pred_check_branch
          %233 = sbr.rel (%p231) target = $region44
        $region43: #{tpu_custom_call.1} parent=39 // pred_region
          %s234 = smul.u32 16, %s16
          %p235 = scmp.lt.s32.totalorder %s234, 31
          %s236 = scalar_select %p235, %s234, 31
          %s237 = smul.addr %s236, 8
          %s238 = scalar_lea.vmem %s0, %s237
          %s239 = smul.u32 16, %s16
        $region44: #{tpu_custom_call.1} parent=39 // pred_fallthru
          _
      $region40: #{tpu_custom_call.1} parent=5 // pred_fallthru
        _
      %p240 = scmp.le.s32.totalorder 1, %s16
      %p241 = scmp.lt.s32.totalorder %s16, 3
      %p242 = pnand %p240, %p241
      %p243 = pneg %p242
      // Predicated region
      $region45: #{tpu_custom_call.1} parent=5 // pred_check
        _
      $region46: #{tpu_custom_call.1} parent=5 // pred_check_branch
        %245 = sbr.rel (%p242) target = $region48
      $region47: #{tpu_custom_call.1} parent=5 // pred_region
        %s246 = ssub.s32 %s16, 1
        %s247 = smul.u32 16, %s21
        %p248 = scmp.lt.s32.totalorder %s247, 31
        %s249 = scalar_select %p248, %s247, 31
        %s250 = smul.addr %s249, 8
        %s251 = scalar_lea.vmem %s0, %s250
        %p252 = pneg %p42
        %p253 = pneg %p39
        %p254 = pneg %p63
        %p255 = pneg %p60
        %p256 = pneg %p84
        %p257 = pneg %p81
        %p258 = pneg %p105
        %p259 = pneg %p102
        %p260 = pneg %p126
        %p261 = pneg %p123
        %p262 = pneg %p147
        %p263 = pneg %p144
        %p264 = pneg %p168
        %p265 = pneg %p165
        %p266 = pneg %p194
        %p267 = pneg %p191
        %s268 = sand.u32 %s181, 1
        %s269 = scalar_lea.sflag [#allocation3], %s268
        %s270 = sand.u32 %s181, 1
        %s271 = smul.addr %s270, 128
        %s272 = scalar_lea.vmem [#allocation2], %s271
        %s273 = smul.u32 16, %s21
        %p274 = scmp.lt.s32.totalorder %s273, 31
        %s275 = scalar_select %p274, %s273, 31
        %s276 = smul.addr %s275, 8
        %s277 = scalar_lea.vmem %s0, %s276
        %s278 = smul.u32 16, %s21
        %s279 = smul.u32 16, %s21
        %v281 = vld [vmem:[%s277] sm:$0xff]
        %v282 = vld [vmem:[%s277 + $0x8] sm:$0xff]
        %v283 = vld [vmem:[%s277 + $0x10] sm:$0xff]
        %v284 = vld [vmem:[%s277 + $0x18] sm:$0xff]
        %v285 = vld [vmem:[%s277 + $0x20] sm:$0xff]
        %v286 = vld [vmem:[%s277 + $0x28] sm:$0xff]
        %v287 = vld [vmem:[%s277 + $0x30] sm:$0xff]
        %v288 = vld [vmem:[%s277 + $0x38] sm:$0xff]
        %v289 = vld [vmem:[%s277 + $0x40] sm:$0xff]
        %v290 = vld [vmem:[%s277 + $0x48] sm:$0xff]
        %v291 = vld [vmem:[%s277 + $0x50] sm:$0xff]
        %v292 = vld [vmem:[%s277 + $0x58] sm:$0xff]
        %v293 = vld [vmem:[%s277 + $0x60] sm:$0xff]
        %v294 = vld [vmem:[%s277 + $0x68] sm:$0xff]
        %v295 = vld [vmem:[%s277 + $0x70] sm:$0xff]
        %v296 = vld [vmem:[%s277 + $0x78] sm:$0xff]
        %v297 = vld [vmem:[%s1] sm:$0xf]
        %v298 = vld [vmem:[%s1 + $0x4] sm:$0xf]
        %v299 = vld [vmem:[%s1 + $0x8] sm:$0xf]
        %v300 = vld [vmem:[%s1 + $0xc] sm:$0xf]
        %v301 = vld [vmem:[%s2] sm:$0x1]
        %v302 = vpack.c.bf16 %v282, %v281
        %v303 = vpack.c.bf16 %v284, %v283
        %v304 = vpack.c.bf16 %v286, %v285
        %v305 = vpack.c.bf16 %v288, %v287
        %v306 = vpack.c.bf16 %v290, %v289
        %v307 = vpack.c.bf16 %v292, %v291
        %v308 = vpack.c.bf16 %v294, %v293
        %v309 = vpack.c.bf16 %v296, %v295
        %v311 = vlaneseq
        %v312 = vshrl.u32 %v311, 7
        %v313 = vsub.s32 0, %v312
        %v314 = vrot.slane %v301, %v313
        %v320 = vunpack.c.l.b16 %v297
        %v321 = vunpack.c.l.b16 %v298
        %v322 = vunpack.c.l.b16 %v299
        %v323 = vunpack.c.l.b16 %v300
        %v324 = vpack.c.b16 %v321, %v320
        %v325 = vpack.c.b16 %v323, %v322
        %vm328 = vcmask 261120
        %v330 = vsel %vm328, %v302, 0
        %v333 = vsel %vm328, %v303, 0
        %v336 = vsel %vm328, %v304, 0
        %v339 = vsel %vm328, %v305, 0
        %v342 = vsel %vm328, %v306, 0
        %v345 = vsel %vm328, %v307, 0
        %v348 = vsel %vm328, %v308, 0
        %v351 = vsel %vm328, %v309, 0
        %353 = vmatprep.subr.bf16.mxu0 0
        %354 = vmatpush1.bf16.msra.mxu0 %v324
        %355 = vmatprep.subr.bf16.mxu0 0
        %356 = vmatpush1.bf16.msra.mxu0 %v325
        %357 = vmatprep.subr.bf16.mxu0 0
        %358 = vmatpush1.bf16.msra.mxu0 0
        %359 = vmatprep.subr.bf16.mxu0 0
        %360 = vmatpush1.bf16.msra.mxu0 0
        %361 = vmatprep.subr.bf16.mxu0 0
        %362 = vmatpush1.bf16.msra.mxu0 0
        %363 = vmatprep.subr.bf16.mxu0 0
        %364 = vmatpush1.bf16.msra.mxu0 0
        %365 = vmatprep.subr.bf16.mxu0 0
        %366 = vmatpush1.bf16.msra.mxu0 0
        %367 = vmatprep.subr.bf16.mxu0 0
        %368 = vmatpush1.bf16.msra.mxu0 0
        %369 = vmatprep.subr.bf16.mxu0 0
        %370 = vmatpush1.bf16.msra.mxu0 0
        %371 = vmatprep.subr.bf16.mxu0 0
        %372 = vmatpush1.bf16.msra.mxu0 0
        %373 = vmatprep.subr.bf16.mxu0 0
        %374 = vmatpush1.bf16.msra.mxu0 0
        %375 = vmatprep.subr.bf16.mxu0 0
        %376 = vmatpush1.bf16.msra.mxu0 0
        %377 = vmatprep.subr.bf16.mxu0 0
        %378 = vmatpush1.bf16.msra.mxu0 0
        %379 = vmatprep.subr.bf16.mxu0 0
        %380 = vmatpush1.bf16.msra.mxu0 0
        %381 = vmatprep.subr.bf16.mxu0 0
        %382 = vmatpush1.bf16.msra.mxu0 0
        %383 = vmatprep.subr.bf16.mxu0 0
        %384 = vmatpush1.bf16.msra.mxu0 0
        %385 = vmatprep.mubr.bf16.mxu0 0
        %386 = vmatmul.mubr.bf16.gmra.mrb[0].mxu0 %v330
        %v387 = vpop.f32.mrb[0].mxu0
        %v388 = vadd.f32 %v314, %v387
        %v389 = vpop.f32.mrb[0].mxu0
        %v390 = vpop.f32.mrb[0].mxu0
        %v391 = vadd.f32 %v314, %v390
        %v392 = vpop.f32.mrb[0].mxu0
        %393 = vmatprep.mubr.bf16.mxu0 0
        %394 = vmatmul.mubr.bf16.gmra.mrb[0].mxu0 %v333
        %v395 = vpop.f32.mrb[0].mxu0
        %v396 = vadd.f32 %v314, %v395
        %v397 = vpop.f32.mrb[0].mxu0
        %v398 = vpop.f32.mrb[0].mxu0
        %v399 = vadd.f32 %v314, %v398
        %v400 = vpop.f32.mrb[0].mxu0
        %401 = vmatprep.mubr.bf16.mxu0 0
        %402 = vmatmul.mubr.bf16.gmra.mrb[0].mxu0 %v336
        %v403 = vpop.f32.mrb[0].mxu0
        %v404 = vadd.f32 %v314, %v403
        %v405 = vpop.f32.mrb[0].mxu0
        %v406 = vpop.f32.mrb[0].mxu0
        %v407 = vadd.f32 %v314, %v406
        %v408 = vpop.f32.mrb[0].mxu0
        %409 = vmatprep.mubr.bf16.mxu0 0
        %410 = vmatmul.mubr.bf16.gmra.mrb[0].mxu0 %v339
        %v411 = vpop.f32.mrb[0].mxu0
        %v412 = vadd.f32 %v314, %v411
        %v413 = vpop.f32.mrb[0].mxu0
        %v414 = vpop.f32.mrb[0].mxu0
        %v415 = vadd.f32 %v314, %v414
        %v416 = vpop.f32.mrb[0].mxu0
        %417 = vmatprep.mubr.bf16.mxu0 0
        %418 = vmatmul.mubr.bf16.gmra.mrb[0].mxu0 %v342
        %v419 = vpop.f32.mrb[0].mxu0
        %v420 = vadd.f32 %v314, %v419
        %v421 = vpop.f32.mrb[0].mxu0
        %v422 = vpop.f32.mrb[0].mxu0
        %v423 = vadd.f32 %v314, %v422
        %v424 = vpop.f32.mrb[0].mxu0
        %425 = vmatprep.mubr.bf16.mxu0 0
        %426 = vmatmul.mubr.bf16.gmra.mrb[0].mxu0 %v345
        %v427 = vpop.f32.mrb[0].mxu0
        %v428 = vadd.f32 %v314, %v427
        %v429 = vpop.f32.mrb[0].mxu0
        %v430 = vpop.f32.mrb[0].mxu0
        %v431 = vadd.f32 %v314, %v430
        %v432 = vpop.f32.mrb[0].mxu0
        %433 = vmatprep.mubr.bf16.mxu0 0
        %434 = vmatmul.mubr.bf16.gmra.mrb[0].mxu0 %v348
        %v435 = vpop.f32.mrb[0].mxu0
        %v436 = vadd.f32 %v314, %v435
        %v437 = vpop.f32.mrb[0].mxu0
        %v438 = vpop.f32.mrb[0].mxu0
        %v439 = vadd.f32 %v314, %v438
        %v440 = vpop.f32.mrb[0].mxu0
        %441 = vmatprep.mubr.bf16.mxu0 0
        %442 = vmatmul.mubr.bf16.gmra.mrb[0].mxu0 %v351
        %v443 = vpop.f32.mrb[0].mxu0
        %v444 = vadd.f32 %v314, %v443
        %v445 = vpop.f32.mrb[0].mxu0
        %v446 = vpop.f32.mrb[0].mxu0
        %v447 = vadd.f32 %v314, %v446
        %v448 = vpop.f32.mrb[0].mxu0
        %449 = vdwg.mxu0
        %v450 = vxor.u32 %v388, 2147483648
        %v451 = vxor.u32 %v391, 2147483648
        %v452 = vxor.u32 %v396, 2147483648
        %v453 = vxor.u32 %v399, 2147483648
        %v454 = vxor.u32 %v404, 2147483648
        %v455 = vxor.u32 %v407, 2147483648
        %v456 = vxor.u32 %v412, 2147483648
        %v457 = vxor.u32 %v415, 2147483648
        %v458 = vxor.u32 %v420, 2147483648
        %v459 = vxor.u32 %v423, 2147483648
        %v460 = vxor.u32 %v428, 2147483648
        %v461 = vxor.u32 %v431, 2147483648
        %v462 = vxor.u32 %v436, 2147483648
        %v463 = vxor.u32 %v439, 2147483648
        %v464 = vxor.u32 %v444, 2147483648
        %v465 = vxor.u32 %v447, 2147483648
        %v466 = vmul.f32 %v450, 1.442695
        %v467 = vpow.pop %v466
        %v468 = vmul.f32 %v451, 1.442695
        %v469 = vpow.pop %v468
        %v470 = vmul.f32 %v452, 1.442695
        %v471 = vpow.pop %v470
        %v472 = vmul.f32 %v453, 1.442695
        %v473 = vpow.pop %v472
        %v474 = vmul.f32 %v454, 1.442695
        %v475 = vpow.pop %v474
        %v476 = vmul.f32 %v455, 1.442695
        %v477 = vpow.pop %v476
        %v478 = vmul.f32 %v456, 1.442695
        %v479 = vpow.pop %v478
        %v480 = vmul.f32 %v457, 1.442695
        %v481 = vpow.pop %v480
        %v482 = vmul.f32 %v458, 1.442695
        %v483 = vpow.pop %v482
        %v484 = vmul.f32 %v459, 1.442695
        %v485 = vpow.pop %v484
        %v486 = vmul.f32 %v460, 1.442695
        %v487 = vpow.pop %v486
        %v488 = vmul.f32 %v461, 1.442695
        %v489 = vpow.pop %v488
        %v490 = vmul.f32 %v462, 1.442695
        %v491 = vpow.pop %v490
        %v492 = vmul.f32 %v463, 1.442695
        %v493 = vpow.pop %v492
        %v494 = vmul.f32 %v464, 1.442695
        %v495 = vpow.pop %v494
        %v496 = vmul.f32 %v465, 1.442695
        %v497 = vpow.pop %v496
        %v498 = vadd.f32 %v467, 1.0
        %v499 = vadd.f32 %v469, 1.0
        %v500 = vadd.f32 %v471, 1.0
        %v501 = vadd.f32 %v473, 1.0
        %v502 = vadd.f32 %v475, 1.0
        %v503 = vadd.f32 %v477, 1.0
        %v504 = vadd.f32 %v479, 1.0
        %v505 = vadd.f32 %v481, 1.0
        %v506 = vadd.f32 %v483, 1.0
        %v507 = vadd.f32 %v485, 1.0
        %v508 = vadd.f32 %v487, 1.0
        %v509 = vadd.f32 %v489, 1.0
        %v510 = vadd.f32 %v491, 1.0
        %v511 = vadd.f32 %v493, 1.0
        %v512 = vadd.f32 %v495, 1.0
        %v513 = vadd.f32 %v497, 1.0
        %v514 = vrcp.pop %v498
        %v515 = vmul.f32 1.0, %v514
        %v516 = vrcp.pop %v499
        %v517 = vmul.f32 1.0, %v516
        %v518 = vrcp.pop %v500
        %v519 = vmul.f32 1.0, %v518
        %v520 = vrcp.pop %v501
        %v521 = vmul.f32 1.0, %v520
        %v522 = vrcp.pop %v502
        %v523 = vmul.f32 1.0, %v522
        %v524 = vrcp.pop %v503
        %v525 = vmul.f32 1.0, %v524
        %v526 = vrcp.pop %v504
        %v527 = vmul.f32 1.0, %v526
        %v528 = vrcp.pop %v505
        %v529 = vmul.f32 1.0, %v528
        %v530 = vrcp.pop %v506
        %v531 = vmul.f32 1.0, %v530
        %v532 = vrcp.pop %v507
        %v533 = vmul.f32 1.0, %v532
        %v534 = vrcp.pop %v508
        %v535 = vmul.f32 1.0, %v534
        %v536 = vrcp.pop %v509
        %v537 = vmul.f32 1.0, %v536
        %v538 = vrcp.pop %v510
        %v539 = vmul.f32 1.0, %v538
        %v540 = vrcp.pop %v511
        %v541 = vmul.f32 1.0, %v540
        %v542 = vrcp.pop %v512
        %v543 = vmul.f32 1.0, %v542
        %v544 = vrcp.pop %v513
        %v545 = vmul.f32 1.0, %v544
        %v546 = vmul.f32 %v388, %v515
        %v547 = vmul.f32 %v391, %v517
        %v548 = vmul.f32 %v396, %v519
        %v549 = vmul.f32 %v399, %v521
        %v550 = vmul.f32 %v404, %v523
        %v551 = vmul.f32 %v407, %v525
        %v552 = vmul.f32 %v412, %v527
        %v553 = vmul.f32 %v415, %v529
        %v554 = vmul.f32 %v420, %v531
        %v555 = vmul.f32 %v423, %v533
        %v556 = vmul.f32 %v428, %v535
        %v557 = vmul.f32 %v431, %v537
        %v558 = vmul.f32 %v436, %v539
        %v559 = vmul.f32 %v439, %v541
        %v560 = vmul.f32 %v444, %v543
        %v561 = vmul.f32 %v447, %v545
        %v562 = vld [vmem:[%s3] sm:$0xf]
        %v563 = vld [vmem:[%s3 + $0x4] sm:$0xf]
        %v564 = vld [vmem:[%s3 + $0x8] sm:$0xf]
        %v565 = vld [vmem:[%s3 + $0xc] sm:$0xf]
        %v566 = vld [vmem:[%s3 + $0x10] sm:$0xf]
        %v567 = vld [vmem:[%s3 + $0x14] sm:$0xf]
        %v568 = vld [vmem:[%s3 + $0x18] sm:$0xf]
        %v569 = vld [vmem:[%s3 + $0x1c] sm:$0xf]
        %v570 = vld [vmem:[%s3 + $0x20] sm:$0xf]
        %v571 = vld [vmem:[%s3 + $0x24] sm:$0xf]
        %v572 = vld [vmem:[%s3 + $0x28] sm:$0xf]
        %v573 = vld [vmem:[%s3 + $0x2c] sm:$0xf]
        %v574 = vld [vmem:[%s3 + $0x30] sm:$0xf]
        %v575 = vld [vmem:[%s3 + $0x34] sm:$0xf]
        %v576 = vld [vmem:[%s3 + $0x38] sm:$0xf]
        %v577 = vld [vmem:[%s3 + $0x3c] sm:$0xf]
        %v578 = vld [vmem:[%s4] sm:$0x1]
        %v579 = vpack.c.bf16 %v547, %v546
        %v580 = vpack.c.bf16 %v549, %v548
        %v581 = vpack.c.bf16 %v551, %v550
        %v582 = vpack.c.bf16 %v553, %v552
        %v583 = vpack.c.bf16 %v555, %v554
        %v584 = vpack.c.bf16 %v557, %v556
        %v585 = vpack.c.bf16 %v559, %v558
        %v586 = vpack.c.bf16 %v561, %v560
        %v588 = vlaneseq
        %v589 = vshrl.u32 %v588, 7
        %v590 = vsub.s32 0, %v589
        %v591 = vrot.slane %v578, %v590
        %v609 = vunpack.c.l.b16 %v562
        %v610 = vunpack.c.l.b16 %v563
        %v611 = vunpack.c.l.b16 %v564
        %v612 = vunpack.c.l.b16 %v565
        %v613 = vunpack.c.l.b16 %v566
        %v614 = vunpack.c.l.b16 %v567
        %v615 = vunpack.c.l.b16 %v568
        %v616 = vunpack.c.l.b16 %v569
        %v617 = vunpack.c.l.b16 %v570
        %v618 = vunpack.c.l.b16 %v571
        %v619 = vunpack.c.l.b16 %v572
        %v620 = vunpack.c.l.b16 %v573
        %v621 = vunpack.c.l.b16 %v574
        %v622 = vunpack.c.l.b16 %v575
        %v623 = vunpack.c.l.b16 %v576
        %v624 = vunpack.c.l.b16 %v577
        %v625 = vpack.c.b16 %v610, %v609
        %v626 = vpack.c.b16 %v612, %v611
        %v627 = vpack.c.b16 %v614, %v613
        %v628 = vpack.c.b16 %v616, %v615
        %v629 = vpack.c.b16 %v618, %v617
        %v630 = vpack.c.b16 %v620, %v619
        %v631 = vpack.c.b16 %v622, %v621
        %v632 = vpack.c.b16 %v624, %v623
        %641 = vmatprep.subr.bf16.mxu0 0
        %642 = vmatpush1.bf16.msra.mxu0 %v625
        %643 = vmatprep.subr.bf16.mxu0 0
        %644 = vmatpush1.bf16.msra.mxu0 %v626
        %645 = vmatprep.subr.bf16.mxu0 0
        %646 = vmatpush1.bf16.msra.mxu0 %v627
        %647 = vmatprep.subr.bf16.mxu0 0
        %648 = vmatpush1.bf16.msra.mxu0 %v628
        %649 = vmatprep.subr.bf16.mxu0 0
        %650 = vmatpush1.bf16.msra.mxu0 %v629
        %651 = vmatprep.subr.bf16.mxu0 0
        %652 = vmatpush1.bf16.msra.mxu0 %v630
        %653 = vmatprep.subr.bf16.mxu0 0
        %654 = vmatpush1.bf16.msra.mxu0 %v631
        %655 = vmatprep.subr.bf16.mxu0 0
        %656 = vmatpush1.bf16.msra.mxu0 %v632
        %657 = vmatprep.subr.bf16.mxu0 0
        %658 = vmatpush1.bf16.msra.mxu0 0
        %659 = vmatprep.subr.bf16.mxu0 0
        %660 = vmatpush1.bf16.msra.mxu0 0
        %661 = vmatprep.subr.bf16.mxu0 0
        %662 = vmatpush1.bf16.msra.mxu0 0
        %663 = vmatprep.subr.bf16.mxu0 0
        %664 = vmatpush1.bf16.msra.mxu0 0
        %665 = vmatprep.subr.bf16.mxu0 0
        %666 = vmatpush1.bf16.msra.mxu0 0
        %667 = vmatprep.subr.bf16.mxu0 0
        %668 = vmatpush1.bf16.msra.mxu0 0
        %669 = vmatprep.subr.bf16.mxu0 0
        %670 = vmatpush1.bf16.msra.mxu0 0
        %671 = vmatprep.subr.bf16.mxu0 0
        %672 = vmatpush1.bf16.msra.mxu0 0
        %673 = vmatprep.mubr.bf16.mxu0 0
        %674 = vmatmul.mubr.bf16.gmra.mrb[0].mxu0 %v579
        %v675 = vpop.f32.mrb[0].mxu0
        %v676 = vadd.f32 %v591, %v675
        %v677 = vpop.f32.mrb[0].mxu0
        %v678 = vpop.f32.mrb[0].mxu0
        %v679 = vadd.f32 %v591, %v678
        %v680 = vpop.f32.mrb[0].mxu0
        %681 = vmatprep.mubr.bf16.mxu0 0
        %682 = vmatmul.mubr.bf16.gmra.mrb[0].mxu0 %v580
        %v683 = vpop.f32.mrb[0].mxu0
        %v684 = vadd.f32 %v591, %v683
        %v685 = vpop.f32.mrb[0].mxu0
        %v686 = vpop.f32.mrb[0].mxu0
        %v687 = vadd.f32 %v591, %v686
        %v688 = vpop.f32.mrb[0].mxu0
        %689 = vmatprep.mubr.bf16.mxu0 0
        %690 = vmatmul.mubr.bf16.gmra.mrb[0].mxu0 %v581
        %v691 = vpop.f32.mrb[0].mxu0
        %v692 = vadd.f32 %v591, %v691
        %v693 = vpop.f32.mrb[0].mxu0
        %v694 = vpop.f32.mrb[0].mxu0
        %v695 = vadd.f32 %v591, %v694
        %v696 = vpop.f32.mrb[0].mxu0
        %697 = vmatprep.mubr.bf16.mxu0 0
        %698 = vmatmul.mubr.bf16.gmra.mrb[0].mxu0 %v582
        %v699 = vpop.f32.mrb[0].mxu0
        %v700 = vadd.f32 %v591, %v699
        %v701 = vpop.f32.mrb[0].mxu0
        %v702 = vpop.f32.mrb[0].mxu0
        %v703 = vadd.f32 %v591, %v702
        %v704 = vpop.f32.mrb[0].mxu0
        %705 = vmatprep.mubr.bf16.mxu0 0
        %706 = vmatmul.mubr.bf16.gmra.mrb[0].mxu0 %v583
        %v707 = vpop.f32.mrb[0].mxu0
        %v708 = vadd.f32 %v591, %v707
        %v709 = vpop.f32.mrb[0].mxu0
        %v710 = vpop.f32.mrb[0].mxu0
        %v711 = vadd.f32 %v591, %v710
        %v712 = vpop.f32.mrb[0].mxu0
        %713 = vmatprep.mubr.bf16.mxu0 0
        %714 = vmatmul.mubr.bf16.gmra.mrb[0].mxu0 %v584
        %v715 = vpop.f32.mrb[0].mxu0
        %v716 = vadd.f32 %v591, %v715
        %v717 = vpop.f32.mrb[0].mxu0
        %v718 = vpop.f32.mrb[0].mxu0
        %v719 = vadd.f32 %v591, %v718
        %v720 = vpop.f32.mrb[0].mxu0
        %721 = vmatprep.mubr.bf16.mxu0 0
        %722 = vmatmul.mubr.bf16.gmra.mrb[0].mxu0 %v585
        %v723 = vpop.f32.mrb[0].mxu0
        %v724 = vadd.f32 %v591, %v723
        %v725 = vpop.f32.mrb[0].mxu0
        %v726 = vpop.f32.mrb[0].mxu0
        %v727 = vadd.f32 %v591, %v726
        %v728 = vpop.f32.mrb[0].mxu0
        %729 = vmatprep.mubr.bf16.mxu0 0
        %730 = vmatmul.mubr.bf16.gmra.mrb[0].mxu0 %v586
        %v731 = vpop.f32.mrb[0].mxu0
        %v732 = vadd.f32 %v591, %v731
        %v733 = vpop.f32.mrb[0].mxu0
        %v734 = vpop.f32.mrb[0].mxu0
        %v735 = vadd.f32 %v591, %v734
        %v736 = vpop.f32.mrb[0].mxu0
        %737 = vdwg.mxu0
        %v738 = vxor.u32 %v676, 2147483648
        %v739 = vxor.u32 %v679, 2147483648
        %v740 = vxor.u32 %v684, 2147483648
        %v741 = vxor.u32 %v687, 2147483648
        %v742 = vxor.u32 %v692, 2147483648
        %v743 = vxor.u32 %v695, 2147483648
        %v744 = vxor.u32 %v700, 2147483648
        %v745 = vxor.u32 %v703, 2147483648
        %v746 = vxor.u32 %v708, 2147483648
        %v747 = vxor.u32 %v711, 2147483648
        %v748 = vxor.u32 %v716, 2147483648
        %v749 = vxor.u32 %v719, 2147483648
        %v750 = vxor.u32 %v724, 2147483648
        %v751 = vxor.u32 %v727, 2147483648
        %v752 = vxor.u32 %v732, 2147483648
        %v753 = vxor.u32 %v735, 2147483648
        %v754 = vmul.f32 %v738, 1.442695
        %v755 = vpow.pop %v754
        %v756 = vmul.f32 %v739, 1.442695
        %v757 = vpow.pop %v756
        %v758 = vmul.f32 %v740, 1.442695
        %v759 = vpow.pop %v758
        %v760 = vmul.f32 %v741, 1.442695
        %v761 = vpow.pop %v760
        %v762 = vmul.f32 %v742, 1.442695
        %v763 = vpow.pop %v762
        %v764 = vmul.f32 %v743, 1.442695
        %v765 = vpow.pop %v764
        %v766 = vmul.f32 %v744, 1.442695
        %v767 = vpow.pop %v766
        %v768 = vmul.f32 %v745, 1.442695
        %v769 = vpow.pop %v768
        %v770 = vmul.f32 %v746, 1.442695
        %v771 = vpow.pop %v770
        %v772 = vmul.f32 %v747, 1.442695
        %v773 = vpow.pop %v772
        %v774 = vmul.f32 %v748, 1.442695
        %v775 = vpow.pop %v774
        %v776 = vmul.f32 %v749, 1.442695
        %v777 = vpow.pop %v776
        %v778 = vmul.f32 %v750, 1.442695
        %v779 = vpow.pop %v778
        %v780 = vmul.f32 %v751, 1.442695
        %v781 = vpow.pop %v780
        %v782 = vmul.f32 %v752, 1.442695
        %v783 = vpow.pop %v782
        %v784 = vmul.f32 %v753, 1.442695
        %v785 = vpow.pop %v784
        %v786 = vadd.f32 %v755, 1.0
        %v787 = vadd.f32 %v757, 1.0
        %v788 = vadd.f32 %v759, 1.0
        %v789 = vadd.f32 %v761, 1.0
        %v790 = vadd.f32 %v763, 1.0
        %v791 = vadd.f32 %v765, 1.0
        %v792 = vadd.f32 %v767, 1.0
        %v793 = vadd.f32 %v769, 1.0
        %v794 = vadd.f32 %v771, 1.0
        %v795 = vadd.f32 %v773, 1.0
        %v796 = vadd.f32 %v775, 1.0
        %v797 = vadd.f32 %v777, 1.0
        %v798 = vadd.f32 %v779, 1.0
        %v799 = vadd.f32 %v781, 1.0
        %v800 = vadd.f32 %v783, 1.0
        %v801 = vadd.f32 %v785, 1.0
        %v802 = vrcp.pop %v786
        %v803 = vmul.f32 1.0, %v802
        %v804 = vrcp.pop %v787
        %v805 = vmul.f32 1.0, %v804
        %v806 = vrcp.pop %v788
        %v807 = vmul.f32 1.0, %v806
        %v808 = vrcp.pop %v789
        %v809 = vmul.f32 1.0, %v808
        %v810 = vrcp.pop %v790
        %v811 = vmul.f32 1.0, %v810
        %v812 = vrcp.pop %v791
        %v813 = vmul.f32 1.0, %v812
        %v814 = vrcp.pop %v792
        %v815 = vmul.f32 1.0, %v814
        %v816 = vrcp.pop %v793
        %v817 = vmul.f32 1.0, %v816
        %v818 = vrcp.pop %v794
        %v819 = vmul.f32 1.0, %v818
        %v820 = vrcp.pop %v795
        %v821 = vmul.f32 1.0, %v820
        %v822 = vrcp.pop %v796
        %v823 = vmul.f32 1.0, %v822
        %v824 = vrcp.pop %v797
        %v825 = vmul.f32 1.0, %v824
        %v826 = vrcp.pop %v798
        %v827 = vmul.f32 1.0, %v826
        %v828 = vrcp.pop %v799
        %v829 = vmul.f32 1.0, %v828
        %v830 = vrcp.pop %v800
        %v831 = vmul.f32 1.0, %v830
        %v832 = vrcp.pop %v801
        %v833 = vmul.f32 1.0, %v832
        %v834 = vmul.f32 %v676, %v803
        %v835 = vmul.f32 %v679, %v805
        %v836 = vmul.f32 %v684, %v807
        %v837 = vmul.f32 %v687, %v809
        %v838 = vmul.f32 %v692, %v811
        %v839 = vmul.f32 %v695, %v813
        %v840 = vmul.f32 %v700, %v815
        %v841 = vmul.f32 %v703, %v817
        %v842 = vmul.f32 %v708, %v819
        %v843 = vmul.f32 %v711, %v821
        %v844 = vmul.f32 %v716, %v823
        %v845 = vmul.f32 %v719, %v825
        %v846 = vmul.f32 %v724, %v827
        %v847 = vmul.f32 %v727, %v829
        %v848 = vmul.f32 %v732, %v831
        %v849 = vmul.f32 %v735, %v833
        %v850 = vld [vmem:[%s5] sm:$0xf]
        %v851 = vld [vmem:[%s5 + $0x4] sm:$0xf]
        %v852 = vld [vmem:[%s5 + $0x8] sm:$0xf]
        %v853 = vld [vmem:[%s5 + $0xc] sm:$0xf]
        %v854 = vld [vmem:[%s5 + $0x10] sm:$0xf]
        %v855 = vld [vmem:[%s5 + $0x14] sm:$0xf]
        %v856 = vld [vmem:[%s5 + $0x18] sm:$0xf]
        %v857 = vld [vmem:[%s5 + $0x1c] sm:$0xf]
        %v858 = vld [vmem:[%s5 + $0x20] sm:$0xf]
        %v859 = vld [vmem:[%s5 + $0x24] sm:$0xf]
        %v860 = vld [vmem:[%s5 + $0x28] sm:$0xf]
        %v861 = vld [vmem:[%s5 + $0x2c] sm:$0xf]
        %v862 = vld [vmem:[%s5 + $0x30] sm:$0xf]
        %v863 = vld [vmem:[%s5 + $0x34] sm:$0xf]
        %v864 = vld [vmem:[%s5 + $0x38] sm:$0xf]
        %v865 = vld [vmem:[%s5 + $0x3c] sm:$0xf]
        %v866 = vld [vmem:[%s6] sm:$0x1]
        %v867 = vpack.c.bf16 %v835, %v834
        %v868 = vpack.c.bf16 %v837, %v836
        %v869 = vpack.c.bf16 %v839, %v838
        %v870 = vpack.c.bf16 %v841, %v840
        %v871 = vpack.c.bf16 %v843, %v842
        %v872 = vpack.c.bf16 %v845, %v844
        %v873 = vpack.c.bf16 %v847, %v846
        %v874 = vpack.c.bf16 %v849, %v848
        %v876 = vlaneseq
        %v877 = vshrl.u32 %v876, 7
        %v878 = vsub.s32 0, %v877
        %v879 = vrot.slane %v866, %v878
        %v897 = vunpack.c.l.b16 %v850
        %v898 = vunpack.c.l.b16 %v851
        %v899 = vunpack.c.l.b16 %v852
        %v900 = vunpack.c.l.b16 %v853
        %v901 = vunpack.c.l.b16 %v854
        %v902 = vunpack.c.l.b16 %v855
        %v903 = vunpack.c.l.b16 %v856
        %v904 = vunpack.c.l.b16 %v857
        %v905 = vunpack.c.l.b16 %v858
        %v906 = vunpack.c.l.b16 %v859
        %v907 = vunpack.c.l.b16 %v860
        %v908 = vunpack.c.l.b16 %v861
        %v909 = vunpack.c.l.b16 %v862
        %v910 = vunpack.c.l.b16 %v863
        %v911 = vunpack.c.l.b16 %v864
        %v912 = vunpack.c.l.b16 %v865
        %v913 = vpack.c.b16 %v898, %v897
        %v914 = vpack.c.b16 %v900, %v899
        %v915 = vpack.c.b16 %v902, %v901
        %v916 = vpack.c.b16 %v904, %v903
        %v917 = vpack.c.b16 %v906, %v905
        %v918 = vpack.c.b16 %v908, %v907
        %v919 = vpack.c.b16 %v910, %v909
        %v920 = vpack.c.b16 %v912, %v911
        %929 = vmatprep.subr.bf16.mxu0 0
        %930 = vmatpush1.bf16.msra.mxu0 %v913
        %931 = vmatprep.subr.bf16.mxu0 0
        %932 = vmatpush1.bf16.msra.mxu0 %v914
        %933 = vmatprep.subr.bf16.mxu0 0
        %934 = vmatpush1.bf16.msra.mxu0 %v915
        %935 = vmatprep.subr.bf16.mxu0 0
        %936 = vmatpush1.bf16.msra.mxu0 %v916
        %937 = vmatprep.subr.bf16.mxu0 0
        %938 = vmatpush1.bf16.msra.mxu0 %v917
        %939 = vmatprep.subr.bf16.mxu0 0
        %940 = vmatpush1.bf16.msra.mxu0 %v918
        %941 = vmatprep.subr.bf16.mxu0 0
        %942 = vmatpush1.bf16.msra.mxu0 %v919
        %943 = vmatprep.subr.bf16.mxu0 0
        %944 = vmatpush1.bf16.msra.mxu0 %v920
        %945 = vmatprep.subr.bf16.mxu0 0
        %946 = vmatpush1.bf16.msra.mxu0 0
        %947 = vmatprep.subr.bf16.mxu0 0
        %948 = vmatpush1.bf16.msra.mxu0 0
        %949 = vmatprep.subr.bf16.mxu0 0
        %950 = vmatpush1.bf16.msra.mxu0 0
        %951 = vmatprep.subr.bf16.mxu0 0
        %952 = vmatpush1.bf16.msra.mxu0 0
        %953 = vmatprep.subr.bf16.mxu0 0
        %954 = vmatpush1.bf16.msra.mxu0 0
        %955 = vmatprep.subr.bf16.mxu0 0
        %956 = vmatpush1.bf16.msra.mxu0 0
        %957 = vmatprep.subr.bf16.mxu0 0
        %958 = vmatpush1.bf16.msra.mxu0 0
        %959 = vmatprep.subr.bf16.mxu0 0
        %960 = vmatpush1.bf16.msra.mxu0 0
        %961 = vmatprep.mubr.bf16.mxu0 0
        %962 = vmatmul.mubr.bf16.gmra.mrb[0].mxu0 %v867
        %v963 = vpop.f32.mrb[0].mxu0
        %v964 = vadd.f32 %v879, %v963
        %v965 = vpop.f32.mrb[0].mxu0
        %v966 = vpop.f32.mrb[0].mxu0
        %v967 = vadd.f32 %v879, %v966
        %v968 = vpop.f32.mrb[0].mxu0
        %969 = vmatprep.mubr.bf16.mxu0 0
        %970 = vmatmul.mubr.bf16.gmra.mrb[0].mxu0 %v868
        %v971 = vpop.f32.mrb[0].mxu0
        %v972 = vadd.f32 %v879, %v971
        %v973 = vpop.f32.mrb[0].mxu0
        %v974 = vpop.f32.mrb[0].mxu0
        %v975 = vadd.f32 %v879, %v974
        %v976 = vpop.f32.mrb[0].mxu0
        %977 = vmatprep.mubr.bf16.mxu0 0
        %978 = vmatmul.mubr.bf16.gmra.mrb[0].mxu0 %v869
        %v979 = vpop.f32.mrb[0].mxu0
        %v980 = vadd.f32 %v879, %v979
        %v981 = vpop.f32.mrb[0].mxu0
        %v982 = vpop.f32.mrb[0].mxu0
        %v983 = vadd.f32 %v879, %v982
        %v984 = vpop.f32.mrb[0].mxu0
        %985 = vmatprep.mubr.bf16.mxu0 0
        %986 = vmatmul.mubr.bf16.gmra.mrb[0].mxu0 %v870
        %v987 = vpop.f32.mrb[0].mxu0
        %v988 = vadd.f32 %v879, %v987
        %v989 = vpop.f32.mrb[0].mxu0
        %v990 = vpop.f32.mrb[0].mxu0
        %v991 = vadd.f32 %v879, %v990
        %v992 = vpop.f32.mrb[0].mxu0
        %993 = vmatprep.mubr.bf16.mxu0 0
        %994 = vmatmul.mubr.bf16.gmra.mrb[0].mxu0 %v871
        %v995 = vpop.f32.mrb[0].mxu0
        %v996 = vadd.f32 %v879, %v995
        %v997 = vpop.f32.mrb[0].mxu0
        %v998 = vpop.f32.mrb[0].mxu0
        %v999 = vadd.f32 %v879, %v998
        %v1000 = vpop.f32.mrb[0].mxu0
        %1001 = vmatprep.mubr.bf16.mxu0 0
        %1002 = vmatmul.mubr.bf16.gmra.mrb[0].mxu0 %v872
        %v1003 = vpop.f32.mrb[0].mxu0
        %v1004 = vadd.f32 %v879, %v1003
        %v1005 = vpop.f32.mrb[0].mxu0
        %v1006 = vpop.f32.mrb[0].mxu0
        %v1007 = vadd.f32 %v879, %v1006
        %v1008 = vpop.f32.mrb[0].mxu0
        %1009 = vmatprep.mubr.bf16.mxu0 0
        %1010 = vmatmul.mubr.bf16.gmra.mrb[0].mxu0 %v873
        %v1011 = vpop.f32.mrb[0].mxu0
        %v1012 = vadd.f32 %v879, %v1011
        %v1013 = vpop.f32.mrb[0].mxu0
        %v1014 = vpop.f32.mrb[0].mxu0
        %v1015 = vadd.f32 %v879, %v1014
        %v1016 = vpop.f32.mrb[0].mxu0
        %1017 = vmatprep.mubr.bf16.mxu0 0
        %1018 = vmatmul.mubr.bf16.gmra.mrb[0].mxu0 %v874
        %v1019 = vpop.f32.mrb[0].mxu0
        %v1020 = vadd.f32 %v879, %v1019
        %v1021 = vpop.f32.mrb[0].mxu0
        %v1022 = vpop.f32.mrb[0].mxu0
        %v1023 = vadd.f32 %v879, %v1022
        %v1024 = vpop.f32.mrb[0].mxu0
        %1025 = vdwg.mxu0
        %1026 = vst [vmem:[%s272] sm:$0xff] %v964
        %1027 = vst [vmem:[%s272 + $0x8] sm:$0xff] %v967
        %1028 = vst [vmem:[%s272 + $0x10] sm:$0xff] %v972
        %1029 = vst [vmem:[%s272 + $0x18] sm:$0xff] %v975
        %1030 = vst [vmem:[%s272 + $0x20] sm:$0xff] %v980
        %1031 = vst [vmem:[%s272 + $0x28] sm:$0xff] %v983
        %1032 = vst [vmem:[%s272 + $0x30] sm:$0xff] %v988
        %1033 = vst [vmem:[%s272 + $0x38] sm:$0xff] %v991
        %1034 = vst [vmem:[%s272 + $0x40] sm:$0xff] %v996
        %1035 = vst [vmem:[%s272 + $0x48] sm:$0xff] %v999
        %1036 = vst [vmem:[%s272 + $0x50] sm:$0xff] %v1004
        %1037 = vst [vmem:[%s272 + $0x58] sm:$0xff] %v1007
        %1038 = vst [vmem:[%s272 + $0x60] sm:$0xff] %v1012
        %1039 = vst [vmem:[%s272 + $0x68] sm:$0xff] %v1015
        %1040 = vst [vmem:[%s272 + $0x70] sm:$0xff] %v1020
        %1041 = vst [vmem:[%s272 + $0x78] sm:$0xff] %v1023
        %s1042 = sand.u32 %s181, 1
        %s1043 = scalar_lea.sflag [#allocation3], %s1042
        %s1044 = sand.u32 %s181, 1
        %s1045 = smul.addr %s1044, 128
        %s1046 = scalar_lea.vmem [#allocation2], %s1045
        // Predicated region
        $region49: #{tpu_custom_call.1} parent=47 // pred_check
          %p1047 = pneg %p191
        $region50: #{tpu_custom_call.1} parent=47 // pred_check_branch
          %1049 = sbr.rel (%p1047) target = $region52
        $region51: #{tpu_custom_call.1} parent=47 // pred_region
          %s1050 = smul.u32 16, %s21
          %s1052 = ssub.s32 2048, 2048
          %1053 = vsyncadd %s1043, %s1052
          %s1054 = smul.addr %s1050, 128
          %s1055 = scalar_lea.hbm %s7, %s1054
          %s1056 = sshll.u32 %s1046, 4
          %s1057 = int_to_ptr.vmem [resolvable:$true] %s1056
          %1062 = dma.vmem_to_hbm [thread:$0]  %s1057, 2048, %s1055, %s1043, 128, 128, 8
        $region52: #{tpu_custom_call.1} parent=47 // pred_fallthru
          _
      $region48: #{tpu_custom_call.1} parent=5 // pred_fallthru
        _
      %p1063 = scmp.le.s32.totalorder 2, %s16
      // Predicated region
      $region53: #{tpu_custom_call.1} parent=5 // pred_check
        %p1064 = pneg %p1063
      $region54: #{tpu_custom_call.1} parent=5 // pred_check_branch
        %1066 = sbr.rel (%p1064) target = $region56
      $region55: #{tpu_custom_call.1} parent=5 // pred_region
        %s1067 = ssub.s32 %s16, 2
        // Predicated region
        $region57: #{tpu_custom_call.1} parent=55 // pred_check
          %p1068 = pneg %p197
        $region58: #{tpu_custom_call.1} parent=55 // pred_check_branch
          %1070 = sbr.rel (%p1068) target = $region60
        $region59: #{tpu_custom_call.1} parent=55 // pred_region
          %s1071 = sand.u32 %s182, 1
          %s1072 = scalar_lea.sflag [#allocation3], %s1071
          %s1073 = sand.u32 %s182, 1
          %s1074 = smul.addr %s1073, 128
          %s1075 = scalar_lea.vmem [#allocation2], %s1074
          %1076 = dma.done %s1072, 2048
        $region60: #{tpu_custom_call.1} parent=55 // pred_fallthru
          _
      $region56: #{tpu_custom_call.1} parent=5 // pred_fallthru
        _
    $region6: #{tpu_custom_call.1} parent=1 // loop_footer
      %s20 = sadd.s32 1, %s16
    $region7: #{tpu_custom_call.1} parent=1 // loop_footer_branch
      %15 = sbr.rel target = $region3
    $region8: #{tpu_custom_call.1} parent=1 // loop_exit
      _
    %1077 = vsyncpa [#allocation3], 1
    %s1078 = scalar_lea.sflag [#allocation3], 1
    %1079 = vsyncpa %s1078, 1

</llo_original>
